<compile_context>
chip_gen: v5e
topology: v5e:2x2
jax: 0.10.0
libtpu: 0.0.40
codegen_flags: <defaults>
</compile_context>

<pallas_src>
import math
import functools

import jax
import jax.numpy as jnp
from jax.experimental import pallas as pl
from jax.experimental.pallas import tpu as pltpu


# --------------------------------------------------------------------------- #
# Kernel 1: LayerNorm + QKV projections + K rotary, packed KV-cache slab.
# --------------------------------------------------------------------------- #
def ln_qkv_kernel(hid_ref, ln_w_ref, ln_b_ref, wq_ref, wk_ref, wv_ref,
                  cos_ref, sin_ref,
                  ln_out_ref, q_out_ref, kv_out_ref, *, head_dim, eps):
    x = hid_ref[0]                                        # (tq, H) f32
    half = head_dim // 2

    mean = jnp.mean(x, axis=-1, keepdims=True)
    var = jnp.mean((x - mean) ** 2, axis=-1, keepdims=True)      # unbiased=False
    ln = (x - mean) * jax.lax.rsqrt(var + eps)
    ln = ln * ln_w_ref[...] + ln_b_ref[...]                      # (1,H) broadcast
    ln_bf = ln.astype(jnp.bfloat16)

    # Projections: weights pre-transposed to (in,out), bf16 in / f32 accumulate.
    q = jnp.dot(ln_bf, wq_ref[...], preferred_element_type=jnp.float32)  # (tq,H)
    k = jnp.dot(ln_bf, wk_ref[...], preferred_element_type=jnp.float32)  # (tq,hd)
    v = jnp.dot(ln_bf, wv_ref[...], preferred_element_type=jnp.float32)  # (tq,hd)

    cos = cos_ref[...]                                    # (tq, hd) f32
    sin = sin_ref[...]
    k_rot = k * cos + jnp.concatenate([-k[:, half:], k[:, :half]], axis=-1) * sin

    ln_out_ref[0] = ln_bf                                 # feeds MLP (parallel_attn)
    q_out_ref[0] = q.astype(jnp.bfloat16)                 # rotary applied in flash
    kv_out_ref[0] = jnp.concatenate([k_rot, v], axis=-1)  # lane-dense [K_rot | V]


# --------------------------------------------------------------------------- #
# Kernel 2: multi-query flash attention (online softmax over KV tiles).
# --------------------------------------------------------------------------- #
def mqa_flash_kernel(q_ref, kv_ref, cos_ref, sin_ref, ctx_ref,
                     qs_ref, m_ref, l_ref, acc_ref,
                     *, hg, tq, tkv, head_dim, scale, neg):
    qt = pl.program_id(2)
    kt = pl.program_id(3)
    half = head_dim // 2
    rows = hg * tq

    @pl.when(kt == 0)
    def _():
        # Rotary + 1/sqrt(hd) scale on q, once per (head-group, q-tile).
        q3 = q_ref[0].astype(jnp.float32)                 # (hg, tq, hd)
        cos = cos_ref[...][None]                          # (1, tq, hd) broadcast
        sin = sin_ref[...][None]
        q_rot = q3 * cos + jnp.concatenate(
            [-q3[..., half:], q3[..., :half]], axis=-1) * sin
        qs_ref[...] = (q_rot * scale).reshape(rows, head_dim).astype(jnp.bfloat16)
        m_ref[...] = jnp.full((rows, 1), neg, jnp.float32)
        l_ref[...] = jnp.zeros((rows, 1), jnp.float32)
        acc_ref[...] = jnp.zeros((rows, head_dim), jnp.float32)

    # Causal skip: this KV tile contributes only if its first column is visible
    # to at least one row of the q tile.
    @pl.when(kt * tkv <= qt * tq + (tq - 1))
    def _():
        k = kv_ref[0, :, :head_dim].astype(jnp.bfloat16)  # (tkv, hd)
        v = kv_ref[0, :, head_dim:].astype(jnp.bfloat16)  # (tkv, hd)

        # scores: contract hd directly (A @ B^T form, no transpose of K).
        s = jax.lax.dot_general(
            qs_ref[...], k, dimension_numbers=(((1,), (1,)), ((), ())),
            preferred_element_type=jnp.float32)           # (rows, tkv)

        # Causal mask via iota compare — no materialized / replicated mask.
        row_pos = qt * tq + (
            jax.lax.broadcasted_iota(jnp.int32, (rows, tkv), 0) % tq)
        col_pos = kt * tkv + jax.lax.broadcasted_iota(jnp.int32, (rows, tkv), 1)
        s = jnp.where(col_pos <= row_pos, s, neg)

        m_new = jnp.maximum(m_ref[...], jnp.max(s, axis=-1, keepdims=True))
        alpha = jnp.exp(m_ref[...] - m_new)
        p = jnp.exp(s - m_new)
        l_ref[...] = alpha * l_ref[...] + jnp.sum(p, axis=-1, keepdims=True)
        acc_ref[...] = alpha * acc_ref[...] + jax.lax.dot_general(
            p.astype(jnp.bfloat16), v, dimension_numbers=(((1,), (0,)), ((), ())),
            preferred_element_type=jnp.float32)
        m_ref[...] = m_new

    @pl.when(kt == pl.num_programs(3) - 1)
    def _():
        out = acc_ref[...] * pl.reciprocal(l_ref[...], approx=True)
        ctx_ref[0] = out.reshape(hg, tq, head_dim).astype(ctx_ref.dtype)


# --------------------------------------------------------------------------- #
# Kernel 3: dense projection + streamed MLP (GELU per 4H chunk) + residuals.
# --------------------------------------------------------------------------- #
def dense_mlp_kernel(ln_ref, ctx_ref, hid_ref, dense_ref, w1_ref, w2_ref,
                     out_ref, acc_ref, *, inv_sqrt2):
    c = pl.program_id(2)

    @pl.when(c == 0)
    def _():
        attn_out = jnp.dot(ctx_ref[0], dense_ref[...],
                           preferred_element_type=jnp.float32)       # (tq, H)
        acc_ref[...] = hid_ref[0] + attn_out                         # residual + attn

    h4 = jnp.dot(ln_ref[0], w1_ref[...],
                 preferred_element_type=jnp.float32)                 # (tq, c4)
    h4 = 0.5 * h4 * (1.0 + jax.lax.erf(h4 * inv_sqrt2))              # exact GELU
    acc_ref[...] += jnp.dot(h4.astype(jnp.bfloat16), w2_ref[...],
                            preferred_element_type=jnp.float32)      # (tq, H)

    @pl.when(c == pl.num_programs(2) - 1)
    def _():
        out_ref[0] = acc_ref[...]


# --------------------------------------------------------------------------- #
# Host-side weight prep: done ONCE at model load, not per forward call.
# --------------------------------------------------------------------------- #
def prepare_params(raw):
    return {
        "ln_w": raw["ln_w"].astype(jnp.float32),            # (1, H)
        "ln_b": raw["ln_b"].astype(jnp.float32),            # (1, H)
        "wq_t": raw["wq"].T.astype(jnp.bfloat16),            # (H, H)
        "wk_t": raw["wk"].T.astype(jnp.bfloat16),            # (H, hd)
        "wv_t": raw["wv"].T.astype(jnp.bfloat16),            # (H, hd)
        "dense_t": raw["dense"].T.astype(jnp.bfloat16),       # (H, H)
        "w1_t": raw["w1"].T.astype(jnp.bfloat16),             # (H, 4H)
        "w2_t": raw["w2"].T.astype(jnp.bfloat16),             # (4H, H)
    }


def _head_group(num_heads, tq, max_rows=1024):
    cap = max(1, max_rows // max(tq, 1))
    for g in range(min(num_heads, cap), 0, -1):
        if num_heads % g == 0:
            return g
    return 1


@functools.partial(jax.jit, static_argnames=("num_heads", "head_dim", "eps"))
def decoder_layer(hidden, p, cos, sin, *, num_heads, head_dim, eps=1e-5):
    B, S, H = hidden.shape
    hd = head_dim
    H4 = p["w1_t"].shape[1]

    tq = min(S, 128)
    tkv = min(S, 512)
    c4 = 512 if (H4 % 512 == 0) else H4                  # TODO(synk): general chunking
    hg = _head_group(num_heads, tq)

    # ----- Kernel 1: LayerNorm + QKV + K rotary ------------------------------
    ln_bf, q_bf, kv = pl.pallas_call(
        functools.partial(ln_qkv_kernel, head_dim=hd, eps=eps),
        out_shape=(
            jax.ShapeDtypeStruct((B, S, H), jnp.bfloat16),        # layernorm out
            jax.ShapeDtypeStruct((B, S, H), jnp.bfloat16),        # q (pre-rotary)
            jax.ShapeDtypeStruct((B, S, 2 * hd), jnp.float32),    # packed [K_rot|V]
        ),
        grid_spec=pltpu.PrefetchScalarGridSpec(
            num_scalar_prefetch=0,
            grid=(B, S // tq),
            in_specs=[
                pl.BlockSpec((1, tq, H), lambda b, qi: (b, qi, 0)),
                pl.BlockSpec((1, H), lambda b, qi: (0, 0)),
                pl.BlockSpec((1, H), lambda b, qi: (0, 0)),
                pl.BlockSpec((H, H), lambda b, qi: (0, 0)),
                pl.BlockSpec((H, hd), lambda b, qi: (0, 0)),
                pl.BlockSpec((H, hd), lambda b, qi: (0, 0)),
                pl.BlockSpec((tq, hd), lambda b, qi: (qi, 0)),
                pl.BlockSpec((tq, hd), lambda b, qi: (qi, 0)),
            ],
            out_specs=(
                pl.BlockSpec((1, tq, H), lambda b, qi: (b, qi, 0)),
                pl.BlockSpec((1, tq, H), lambda b, qi: (b, qi, 0)),
                pl.BlockSpec((1, tq, 2 * hd), lambda b, qi: (b, qi, 0)),
            ),
        ),
        compiler_params=pltpu.CompilerParams(
            dimension_semantics=("parallel", "parallel")),
    )(hidden, p["ln_w"], p["ln_b"], p["wq_t"], p["wk_t"], p["wv_t"], cos, sin)

    # Wrapper-side layout plumbing: split heads (no in-kernel lane concats).
    q4 = q_bf.reshape(B, S, num_heads, hd).transpose(0, 2, 1, 3)   # (B, nH, S, hd)

    # ----- Kernel 2: MQA flash attention -------------------------------------
    ctx = pl.pallas_call(
        functools.partial(mqa_flash_kernel, hg=hg, tq=tq, tkv=tkv, head_dim=hd,
                          scale=1.0 / math.sqrt(hd), neg=-1e30),
        out_shape=jax.ShapeDtypeStruct((B, num_heads, S, hd), jnp.bfloat16),
        grid_spec=pltpu.PrefetchScalarGridSpec(
            num_scalar_prefetch=0,
            grid=(B, num_heads // hg, S // tq, S // tkv),
            in_specs=[
                pl.BlockSpec((1, hg, tq, hd), lambda b, h, qi, ki: (b, h, qi, 0)),
                pl.BlockSpec((1, tkv, 2 * hd), lambda b, h, qi, ki: (b, ki, 0)),
                pl.BlockSpec((tq, hd), lambda b, h, qi, ki: (qi, 0)),
                pl.BlockSpec((tq, hd), lambda b, h, qi, ki: (qi, 0)),
            ],
            out_specs=pl.BlockSpec((1, hg, tq, hd),
                                   lambda b, h, qi, ki: (b, h, qi, 0)),
            scratch_shapes=[
                pltpu.VMEM((hg * tq, hd), jnp.bfloat16),    # rotated+scaled q
                pltpu.VMEM((hg * tq, 1), jnp.float32),      # running max m
                pltpu.VMEM((hg * tq, 1), jnp.float32),      # running sum l
                pltpu.VMEM((hg * tq, hd), jnp.float32),     # accumulator
            ],
        ),
        compiler_params=pltpu.CompilerParams(
            dimension_semantics=("parallel", "parallel", "parallel", "arbitrary")),
    )(q4, kv, cos, sin)

    ctx_flat = ctx.transpose(0, 2, 1, 3).reshape(B, S, H)          # (B, S, H) bf16

    # ----- Kernel 3: dense + streamed MLP + residual epilogue ----------------
    out = pl.pallas_call(
        functools.partial(dense_mlp_kernel, inv_sqrt2=1.0 / math.sqrt(2.0)),
        out_shape=jax.ShapeDtypeStruct((B, S, H), jnp.float32),
        grid_spec=pltpu.PrefetchScalarGridSpec(
            num_scalar_prefetch=0,
            grid=(B, S // tq, H4 // c4),
            in_specs=[
                pl.BlockSpec((1, tq, H), lambda b, qi, c: (b, qi, 0)),   # ln
                pl.BlockSpec((1, tq, H), lambda b, qi, c: (b, qi, 0)),   # ctx
                pl.BlockSpec((1, tq, H), lambda b, qi, c: (b, qi, 0)),   # residual
                pl.BlockSpec((H, H), lambda b, qi, c: (0, 0)),           # dense^T
                pl.BlockSpec((H, c4), lambda b, qi, c: (0, c)),          # w1^T chunk
                pl.BlockSpec((c4, H), lambda b, qi, c: (c, 0)),          # w2^T chunk
            ],
            out_specs=pl.BlockSpec((1, tq, H), lambda b, qi, c: (b, qi, 0)),
            scratch_shapes=[pltpu.VMEM((tq, H), jnp.float32)],
        ),
        compiler_params=pltpu.CompilerParams(
            dimension_semantics=("parallel", "parallel", "arbitrary")),
    )(ln_bf, ctx_flat, hidden, p["dense_t"], p["w1_t"], p["w2_t"])

    return out, kv[..., :hd], kv[..., hd:]


# --------------------------------------------------------------------------- #
# Pure-JAX mirror of the PyTorch DecoderLayer forward (eval mode, f32).
# --------------------------------------------------------------------------- #
def reference(hidden, p, cos, sin, *, num_heads, head_dim, eps=1e-5):
    B, S, H = hidden.shape
    x = hidden
    mean = x.mean(-1, keepdims=True)
    var = ((x - mean) ** 2).mean(-1, keepdims=True)
    ln = (x - mean) / jnp.sqrt(var + eps) * p["ln_w"][0] + p["ln_b"][0]

    q = ln @ p["wq"].T
    k = ln @ p["wk"].T
    v = ln @ p["wv"].T
    q = q.reshape(B, S, num_heads, head_dim).transpose(0, 2, 1, 3)   # (B,nH,S,hd)
    k = k[:, None]                                                   # (B,1,S,hd)
    v = v[:, None]

    def rh(t):
        return jnp.concatenate([-t[..., head_dim // 2:], t[..., :head_dim // 2]], -1)

    q = q * cos + rh(q) * sin
    k = k * cos + rh(k) * sin

    att = q @ jnp.swapaxes(k, -1, -2) / math.sqrt(head_dim)
    mask = jnp.where(jnp.tril(jnp.ones((S, S))) == 1, 0.0,
                     jnp.finfo(jnp.float32).min)
    att = att + mask
    att = att - att.max(-1, keepdims=True)
    att = jnp.exp(att)
    att = att / att.sum(-1, keepdims=True)
    ao = (att @ v).transpose(0, 2, 1, 3).reshape(B, S, H)
    ao = ao @ p["dense"].T

    h4 = ln @ p["w1"].T
    h4 = 0.5 * h4 * (1.0 + jax.lax.erf(h4 / math.sqrt(2.0)))
    mlp = h4 @ p["w2"].T + ao
    return x + mlp, k[:, 0], v[:, 0]


if __name__ == "__main__":
    B, S, H = 2, 8, 32
    NUM_HEADS, HEAD_DIM = 4, 8
    H4 = 4 * H

    key = jax.random.PRNGKey(0)
    ks = jax.random.split(key, 10)
    sc = 0.05
    params = {
        "ln_w":  1.0 + sc * jax.random.normal(ks[0], (1, H), jnp.float32),
        "ln_b":  sc * jax.random.normal(ks[1], (1, H), jnp.float32),
        "wq":    sc * jax.random.normal(ks[2], (H, H), jnp.float32),
        "wk":    sc * jax.random.normal(ks[3], (HEAD_DIM, H), jnp.float32),
        "wv":    sc * jax.random.normal(ks[4], (HEAD_DIM, H), jnp.float32),
        "dense": sc * jax.random.normal(ks[5], (H, H), jnp.float32),
        "w1":    sc * jax.random.normal(ks[6], (H4, H), jnp.float32),
        "w2":    sc * jax.random.normal(ks[7], (H, H4), jnp.float32),
    }
    hidden = jax.random.normal(ks[8], (B, S, H), jnp.float32)

    # Rotary embeddings (standard Falcon rotary, shared across batch/heads).
    pos = jnp.arange(S, dtype=jnp.float32)[:, None]
    inv_freq = 1.0 / (10000.0 ** (jnp.arange(0, HEAD_DIM, 2, dtype=jnp.float32)
                                  / HEAD_DIM))
    freqs = pos * inv_freq[None, :]                  # (S, hd/2)
    emb = jnp.concatenate([freqs, freqs], axis=-1)   # (S, hd)
    cos, sin = jnp.cos(emb), jnp.sin(emb)

    prepped = prepare_params(params)                 # once, at "model load"

    out, kpast, vpast = decoder_layer(hidden, prepped, cos, sin,
                                      num_heads=NUM_HEADS, head_dim=HEAD_DIM)
    jax.block_until_ready((out, kpast, vpast))

    ro, rk, rv = reference(hidden, params, cos, sin,
                           num_heads=NUM_HEADS, head_dim=HEAD_DIM)
    # bf16 matmul operands throughout -> loosened tolerances vs f32 reference.
    assert jnp.allclose(out, ro, atol=2e-2, rtol=2e-2)
    assert jnp.allclose(kpast, rk, atol=2e-2, rtol=2e-2)
    assert jnp.allclose(vpast, rv, atol=2e-2, rtol=2e-2)

    print("KERNEL_OK")
</pallas_src>

<mosaic_0001>
module attributes {stable_mosaic.version = 11 : i64} {
  func.func @ln_qkv_kernel(%arg0: i32, %arg1: i32, %arg2: memref<1x8x32xf32, #tpu.memory_space<vmem>>, %arg3: memref<1x32xf32, #tpu.memory_space<vmem>>, %arg4: memref<1x32xf32, #tpu.memory_space<vmem>>, %arg5: memref<32x32xbf16, #tpu.memory_space<vmem>>, %arg6: memref<32x8xbf16, #tpu.memory_space<vmem>>, %arg7: memref<32x8xbf16, #tpu.memory_space<vmem>>, %arg8: memref<8x8xf32, #tpu.memory_space<vmem>>, %arg9: memref<8x8xf32, #tpu.memory_space<vmem>>, %arg10: memref<1x8x32xbf16, #tpu.memory_space<vmem>>, %arg11: memref<1x8x32xbf16, #tpu.memory_space<vmem>>, %arg12: memref<1x8x16xf32, #tpu.memory_space<vmem>>) attributes {dimension_semantics = [#tpu.dimension_semantics<parallel>, #tpu.dimension_semantics<parallel>], iteration_bounds = array<i64: 2, 1>, scalar_prefetch = 0 : i64, scratch_operands = 0 : i64, tpu.core_type = #tpu.core_type<tc>, window_params = [{transform_indices = @transform_0, window_bounds = array<i64: 1, 8, 32>}, {pipeline_mode = #tpu.pipeline_mode<synchronous>, transform_indices = @transform_1, window_bounds = array<i64: 1, 32>}, {pipeline_mode = #tpu.pipeline_mode<synchronous>, transform_indices = @transform_2, window_bounds = array<i64: 1, 32>}, {pipeline_mode = #tpu.pipeline_mode<synchronous>, transform_indices = @transform_3, window_bounds = array<i64: 32, 32>}, {pipeline_mode = #tpu.pipeline_mode<synchronous>, transform_indices = @transform_4, window_bounds = array<i64: 32, 8>}, {pipeline_mode = #tpu.pipeline_mode<synchronous>, transform_indices = @transform_5, window_bounds = array<i64: 32, 8>}, {transform_indices = @transform_6, window_bounds = array<i64: 8, 8>}, {transform_indices = @transform_7, window_bounds = array<i64: 8, 8>}, {transform_indices = @transform_8, window_bounds = array<i64: 1, 8, 32>}, {transform_indices = @transform_9, window_bounds = array<i64: 1, 8, 32>}, {transform_indices = @transform_10, window_bounds = array<i64: 1, 8, 16>}]} {
    %c0 = arith.constant 0 : index
    %c0_0 = arith.constant 0 : index
    %c0_1 = arith.constant 0 : index
    %0 = vector.load %arg2[%c0, %c0_0, %c0_1] : memref<1x8x32xf32, #tpu.memory_space<vmem>>, vector<1x8x32xf32>
    %1 = vector.shape_cast %0 : vector<1x8x32xf32> to vector<8x32xf32>
    %cst = arith.constant dense<0.000000e+00> : vector<8xf32>
    %2 = vector.multi_reduction <add>, %1, %cst [1] : vector<8x32xf32> to vector<8xf32>
    %3 = vector.shape_cast %2 : vector<8xf32> to vector<8x1xf32>
    %cst_2 = arith.constant 3.200000e+01 : f32
    %4 = vector.broadcast %cst_2 : f32 to vector<8x1xf32>
    %5 = arith.divf %3, %4 : vector<8x1xf32>
    %6 = vector.broadcast %5 : vector<8x1xf32> to vector<8x32xf32>
    %7 = arith.subf %1, %6 : vector<8x32xf32>
    %8 = arith.mulf %7, %7 : vector<8x32xf32>
    %cst_3 = arith.constant dense<0.000000e+00> : vector<8xf32>
    %9 = vector.multi_reduction <add>, %8, %cst_3 [1] : vector<8x32xf32> to vector<8xf32>
    %10 = vector.shape_cast %9 : vector<8xf32> to vector<8x1xf32>
    %cst_4 = arith.constant 3.200000e+01 : f32
    %11 = vector.broadcast %cst_4 : f32 to vector<8x1xf32>
    %12 = arith.divf %10, %11 : vector<8x1xf32>
    %13 = vector.broadcast %5 : vector<8x1xf32> to vector<8x32xf32>
    %14 = arith.subf %1, %13 : vector<8x32xf32>
    %cst_5 = arith.constant 9.99999974E-6 : f32
    %15 = vector.broadcast %cst_5 : f32 to vector<8x1xf32>
    %16 = arith.addf %12, %15 : vector<8x1xf32>
    %17 = math.rsqrt %16 : vector<8x1xf32>
    %18 = vector.broadcast %17 : vector<8x1xf32> to vector<8x32xf32>
    %19 = arith.mulf %14, %18 : vector<8x32xf32>
    %c0_6 = arith.constant 0 : index
    %c0_7 = arith.constant 0 : index
    %20 = vector.load %arg3[%c0_6, %c0_7] : memref<1x32xf32, #tpu.memory_space<vmem>>, vector<1x32xf32>
    %21 = vector.broadcast %20 : vector<1x32xf32> to vector<8x32xf32>
    %22 = arith.mulf %19, %21 : vector<8x32xf32>
    %c0_8 = arith.constant 0 : index
    %c0_9 = arith.constant 0 : index
    %23 = vector.load %arg4[%c0_8, %c0_9] : memref<1x32xf32, #tpu.memory_space<vmem>>, vector<1x32xf32>
    %24 = vector.broadcast %23 : vector<1x32xf32> to vector<8x32xf32>
    %25 = arith.addf %22, %24 : vector<8x32xf32>
    %26 = arith.truncf %25 : vector<8x32xf32> to vector<8x32xbf16>
    %c0_10 = arith.constant 0 : index
    %c0_11 = arith.constant 0 : index
    %27 = vector.load %arg5[%c0_10, %c0_11] : memref<32x32xbf16, #tpu.memory_space<vmem>>, vector<32x32xbf16>
    %cst_12 = arith.constant dense<0.000000e+00> : vector<8x32xf32>
    %28 = tpu.matmul %26, %27, %cst_12 {dimension_numbers = #tpu.dot_dimension_numbers<[1], [0], [0], [1], [0, 0, 1, 1], [], []>} : vector<8x32xbf16>, vector<32x32xbf16>, vector<8x32xf32> -> vector<8x32xf32>
    %c0_13 = arith.constant 0 : index
    %c0_14 = arith.constant 0 : index
    %29 = vector.load %arg6[%c0_13, %c0_14] : memref<32x8xbf16, #tpu.memory_space<vmem>>, vector<32x8xbf16>
    %cst_15 = arith.constant dense<0.000000e+00> : vector<8x8xf32>
    %30 = tpu.matmul %26, %29, %cst_15 {dimension_numbers = #tpu.dot_dimension_numbers<[1], [0], [0], [1], [0, 0, 1, 1], [], []>} : vector<8x32xbf16>, vector<32x8xbf16>, vector<8x8xf32> -> vector<8x8xf32>
    %c0_16 = arith.constant 0 : index
    %c0_17 = arith.constant 0 : index
    %31 = vector.load %arg7[%c0_16, %c0_17] : memref<32x8xbf16, #tpu.memory_space<vmem>>, vector<32x8xbf16>
    %cst_18 = arith.constant dense<0.000000e+00> : vector<8x8xf32>
    %32 = tpu.matmul %26, %31, %cst_18 {dimension_numbers = #tpu.dot_dimension_numbers<[1], [0], [0], [1], [0, 0, 1, 1], [], []>} : vector<8x32xbf16>, vector<32x8xbf16>, vector<8x8xf32> -> vector<8x8xf32>
    %c0_19 = arith.constant 0 : index
    %c0_20 = arith.constant 0 : index
    %33 = vector.load %arg8[%c0_19, %c0_20] : memref<8x8xf32, #tpu.memory_space<vmem>>, vector<8x8xf32>
    %c0_21 = arith.constant 0 : index
    %c0_22 = arith.constant 0 : index
    %34 = vector.load %arg9[%c0_21, %c0_22] : memref<8x8xf32, #tpu.memory_space<vmem>>, vector<8x8xf32>
    %35 = arith.mulf %30, %33 : vector<8x8xf32>
    %36 = vector.extract_strided_slice %30 {offsets = [0, 4], sizes = [8, 4], strides = [1, 1]} : vector<8x8xf32> to vector<8x4xf32>
    %cst_23 = arith.constant 0.000000e+00 : f32
    %37 = vector.broadcast %cst_23 : f32 to vector<8x4xf32>
    %38 = arith.subf %37, %36 : vector<8x4xf32>
    %39 = vector.extract_strided_slice %30 {offsets = [0, 0], sizes = [8, 4], strides = [1, 1]} : vector<8x8xf32> to vector<8x4xf32>
    %40 = tpu.concatenate %38, %39 in 1 : vector<8x4xf32>, vector<8x4xf32> -> vector<8x8xf32>
    %41 = arith.mulf %40, %34 : vector<8x8xf32>
    %42 = arith.addf %35, %41 : vector<8x8xf32>
    %c0_24 = arith.constant 0 : index
    %c0_25 = arith.constant 0 : index
    %c0_26 = arith.constant 0 : index
    %43 = vector.load %arg10[%c0_24, %c0_25, %c0_26] : memref<1x8x32xbf16, #tpu.memory_space<vmem>>, vector<1x8x32xbf16>
    %44 = vector.shape_cast %43 : vector<1x8x32xbf16> to vector<8x32xbf16>
    %45 = vector.shape_cast %26 : vector<8x32xbf16> to vector<1x8x32xbf16>
    tpu.vector_store %arg10[%c0_24, %c0_25, %c0_26], %45 {strides = array<i32>} : memref<1x8x32xbf16, #tpu.memory_space<vmem>>, vector<1x8x32xbf16>,
    %46 = arith.truncf %28 : vector<8x32xf32> to vector<8x32xbf16>
    %c0_27 = arith.constant 0 : index
    %c0_28 = arith.constant 0 : index
    %c0_29 = arith.constant 0 : index
    %47 = vector.load %arg11[%c0_27, %c0_28, %c0_29] : memref<1x8x32xbf16, #tpu.memory_space<vmem>>, vector<1x8x32xbf16>
    %48 = vector.shape_cast %47 : vector<1x8x32xbf16> to vector<8x32xbf16>
    %49 = vector.shape_cast %46 : vector<8x32xbf16> to vector<1x8x32xbf16>
    tpu.vector_store %arg11[%c0_27, %c0_28, %c0_29], %49 {strides = array<i32>} : memref<1x8x32xbf16, #tpu.memory_space<vmem>>, vector<1x8x32xbf16>,
    %50 = tpu.concatenate %42, %32 in 1 : vector<8x8xf32>, vector<8x8xf32> -> vector<8x16xf32>
    %c0_30 = arith.constant 0 : index
    %c0_31 = arith.constant 0 : index
    %c0_32 = arith.constant 0 : index
    %51 = vector.load %arg12[%c0_30, %c0_31, %c0_32] : memref<1x8x16xf32, #tpu.memory_space<vmem>>, vector<1x8x16xf32>
    %52 = vector.shape_cast %51 : vector<1x8x16xf32> to vector<8x16xf32>
    %53 = vector.shape_cast %50 : vector<8x16xf32> to vector<1x8x16xf32>
    tpu.vector_store %arg12[%c0_30, %c0_31, %c0_32], %53 {strides = array<i32>} : memref<1x8x16xf32, #tpu.memory_space<vmem>>, vector<1x8x16xf32>,
    return
  }
  func.func @transform_0(%arg0: i32, %arg1: i32) -> (i32, i32, i32) {
    %c0_i32 = arith.constant 0 : i32
    %c0_i32_0 = arith.constant 0 : i32
    return %arg0, %arg1, %c0_i32 : i32, i32, i32
  }
  func.func @transform_1(%arg0: i32, %arg1: i32) -> (i32, i32) {
    %c0_i32 = arith.constant 0 : i32
    %c0_i32_0 = arith.constant 0 : i32
    %c0_i32_1 = arith.constant 0 : i32
    return %c0_i32, %c0_i32_0 : i32, i32
  }
  func.func @transform_2(%arg0: i32, %arg1: i32) -> (i32, i32) {
    %c0_i32 = arith.constant 0 : i32
    %c0_i32_0 = arith.constant 0 : i32
    %c0_i32_1 = arith.constant 0 : i32
    return %c0_i32, %c0_i32_0 : i32, i32
  }
  func.func @transform_3(%arg0: i32, %arg1: i32) -> (i32, i32) {
    %c0_i32 = arith.constant 0 : i32
    %c0_i32_0 = arith.constant 0 : i32
    %c0_i32_1 = arith.constant 0 : i32
    return %c0_i32, %c0_i32_0 : i32, i32
  }
  func.func @transform_4(%arg0: i32, %arg1: i32) -> (i32, i32) {
    %c0_i32 = arith.constant 0 : i32
    %c0_i32_0 = arith.constant 0 : i32
    %c0_i32_1 = arith.constant 0 : i32
    return %c0_i32, %c0_i32_0 : i32, i32
  }
  func.func @transform_5(%arg0: i32, %arg1: i32) -> (i32, i32) {
    %c0_i32 = arith.constant 0 : i32
    %c0_i32_0 = arith.constant 0 : i32
    %c0_i32_1 = arith.constant 0 : i32
    return %c0_i32, %c0_i32_0 : i32, i32
  }
  func.func @transform_6(%arg0: i32, %arg1: i32) -> (i32, i32) {
    %c0_i32 = arith.constant 0 : i32
    %c0_i32_0 = arith.constant 0 : i32
    return %arg1, %c0_i32 : i32, i32
  }
  func.func @transform_7(%arg0: i32, %arg1: i32) -> (i32, i32) {
    %c0_i32 = arith.constant 0 : i32
    %c0_i32_0 = arith.constant 0 : i32
    return %arg1, %c0_i32 : i32, i32
  }
  func.func @transform_8(%arg0: i32, %arg1: i32) -> (i32, i32, i32) {
    %c0_i32 = arith.constant 0 : i32
    %c0_i32_0 = arith.constant 0 : i32
    return %arg0, %arg1, %c0_i32 : i32, i32, i32
  }
  func.func @transform_9(%arg0: i32, %arg1: i32) -> (i32, i32, i32) {
    %c0_i32 = arith.constant 0 : i32
    %c0_i32_0 = arith.constant 0 : i32
    return %arg0, %arg1, %c0_i32 : i32, i32, i32
  }
  func.func @transform_10(%arg0: i32, %arg1: i32) -> (i32, i32, i32) {
    %c0_i32 = arith.constant 0 : i32
    %c0_i32_0 = arith.constant 0 : i32
    return %arg0, %arg1, %c0_i32 : i32, i32, i32
  }
}

module attributes {stable_mosaic.version = 11 : i64} {
  func.func @mqa_flash_kernel(%arg0: i32, %arg1: i32, %arg2: i32, %arg3: i32, %arg4: memref<1x4x8x8xbf16, #tpu.memory_space<vmem>>, %arg5: memref<1x8x16xf32, #tpu.memory_space<vmem>>, %arg6: memref<8x8xf32, #tpu.memory_space<vmem>>, %arg7: memref<8x8xf32, #tpu.memory_space<vmem>>, %arg8: memref<1x4x8x8xbf16, #tpu.memory_space<vmem>>, %arg9: memref<32x8xbf16, #tpu.memory_space<vmem>>, %arg10: memref<32x1xf32, #tpu.memory_space<vmem>>, %arg11: memref<32x1xf32, #tpu.memory_space<vmem>>, %arg12: memref<32x8xf32, #tpu.memory_space<vmem>>) attributes {dimension_semantics = [#tpu.dimension_semantics<parallel>, #tpu.dimension_semantics<parallel>, #tpu.dimension_semantics<parallel>, #tpu.dimension_semantics<arbitrary>], iteration_bounds = array<i64: 2, 1, 1, 1>, scalar_prefetch = 0 : i64, scratch_operands = 4 : i64, tpu.core_type = #tpu.core_type<tc>, window_params = [{transform_indices = @transform_0, window_bounds = array<i64: 1, 4, 8, 8>}, {transform_indices = @transform_1, window_bounds = array<i64: 1, 8, 16>}, {transform_indices = @transform_2, window_bounds = array<i64: 8, 8>}, {transform_indices = @transform_3, window_bounds = array<i64: 8, 8>}, {transform_indices = @transform_4, window_bounds = array<i64: 1, 4, 8, 8>}]} {
    %c0_i32 = arith.constant 0 : i32
    %0 = arith.cmpi eq, %arg3, %c0_i32 : i32
    %1 = arith.extui %0 : i1 to i32
    %c0_i32_0 = arith.constant 0 : i32
    %2 = arith.cmpi ne, %1, %c0_i32_0 : i32
    scf.if %2 {
      %c0 = arith.constant 0 : index
      %c0_5 = arith.constant 0 : index
      %c0_6 = arith.constant 0 : index
      %c0_7 = arith.constant 0 : index
      %12 = vector.load %arg4[%c0, %c0_5, %c0_6, %c0_7] : memref<1x4x8x8xbf16, #tpu.memory_space<vmem>>, vector<1x4x8x8xbf16>
      %13 = vector.shape_cast %12 : vector<1x4x8x8xbf16> to vector<4x8x8xbf16>
      %14 = arith.extf %13 : vector<4x8x8xbf16> to vector<4x8x8xf32>
      %c0_8 = arith.constant 0 : index
      %c0_9 = arith.constant 0 : index
      %15 = vector.load %arg6[%c0_8, %c0_9] : memref<8x8xf32, #tpu.memory_space<vmem>>, vector<8x8xf32>
      %16 = vector.shape_cast %15 : vector<8x8xf32> to vector<1x8x8xf32>
      %c0_10 = arith.constant 0 : index
      %c0_11 = arith.constant 0 : index
      %17 = vector.load %arg7[%c0_10, %c0_11] : memref<8x8xf32, #tpu.memory_space<vmem>>, vector<8x8xf32>
      %18 = vector.shape_cast %17 : vector<8x8xf32> to vector<1x8x8xf32>
      %19 = vector.broadcast %16 : vector<1x8x8xf32> to vector<4x8x8xf32>
      %20 = arith.mulf %14, %19 : vector<4x8x8xf32>
      %21 = vector.extract_strided_slice %14 {offsets = [0, 0, 4], sizes = [4, 8, 4], strides = [1, 1, 1]} : vector<4x8x8xf32> to vector<4x8x4xf32>
      %cst = arith.constant 0.000000e+00 : f32
      %22 = vector.broadcast %cst : f32 to vector<4x8x4xf32>
      %23 = arith.subf %22, %21 : vector<4x8x4xf32>
      %24 = vector.extract_strided_slice %14 {offsets = [0, 0, 0], sizes = [4, 8, 4], strides = [1, 1, 1]} : vector<4x8x8xf32> to vector<4x8x4xf32>
      %25 = tpu.concatenate %23, %24 in 2 : vector<4x8x4xf32>, vector<4x8x4xf32> -> vector<4x8x8xf32>
      %26 = vector.broadcast %18 : vector<1x8x8xf32> to vector<4x8x8xf32>
      %27 = arith.mulf %25, %26 : vector<4x8x8xf32>
      %28 = arith.addf %20, %27 : vector<4x8x8xf32>
      %cst_12 = arith.constant 0.353553385 : f32
      %29 = vector.broadcast %cst_12 : f32 to vector<4x8x8xf32>
      %30 = arith.mulf %28, %29 : vector<4x8x8xf32>
      %31 = vector.shape_cast %30 : vector<4x8x8xf32> to vector<32x8xf32>
      %32 = arith.truncf %31 : vector<32x8xf32> to vector<32x8xbf16>
      %c0_13 = arith.constant 0 : index
      %c0_14 = arith.constant 0 : index
      %33 = vector.load %arg9[%c0_13, %c0_14] : memref<32x8xbf16, #tpu.memory_space<vmem>>, vector<32x8xbf16>
      tpu.vector_store %arg9[%c0_13, %c0_14], %32 {strides = array<i32>} : memref<32x8xbf16, #tpu.memory_space<vmem>>, vector<32x8xbf16>,
      %cst_15 = arith.constant -1.000000e+30 : f32
      %34 = vector.broadcast %cst_15 : f32 to vector<32x1xf32>
      %c0_16 = arith.constant 0 : index
      %c0_17 = arith.constant 0 : index
      %35 = vector.load %arg10[%c0_16, %c0_17] : memref<32x1xf32, #tpu.memory_space<vmem>>, vector<32x1xf32>
      tpu.vector_store %arg10[%c0_16, %c0_17], %34 {strides = array<i32>} : memref<32x1xf32, #tpu.memory_space<vmem>>, vector<32x1xf32>,
      %cst_18 = arith.constant 0.000000e+00 : f32
      %36 = vector.broadcast %cst_18 : f32 to vector<32x1xf32>
      %c0_19 = arith.constant 0 : index
      %c0_20 = arith.constant 0 : index
      %37 = vector.load %arg11[%c0_19, %c0_20] : memref<32x1xf32, #tpu.memory_space<vmem>>, vector<32x1xf32>
      tpu.vector_store %arg11[%c0_19, %c0_20], %36 {strides = array<i32>} : memref<32x1xf32, #tpu.memory_space<vmem>>, vector<32x1xf32>,
      %cst_21 = arith.constant 0.000000e+00 : f32
      %38 = vector.broadcast %cst_21 : f32 to vector<32x8xf32>
      %c0_22 = arith.constant 0 : index
      %c0_23 = arith.constant 0 : index
      %39 = vector.load %arg12[%c0_22, %c0_23] : memref<32x8xf32, #tpu.memory_space<vmem>>, vector<32x8xf32>
      tpu.vector_store %arg12[%c0_22, %c0_23], %38 {strides = array<i32>} : memref<32x8xf32, #tpu.memory_space<vmem>>, vector<32x8xf32>,
    } else {
    }
    %c8_i32 = arith.constant 8 : i32
    %3 = arith.muli %arg3, %c8_i32 : i32
    %c8_i32_1 = arith.constant 8 : i32
    %4 = arith.muli %arg2, %c8_i32_1 : i32
    %c7_i32 = arith.constant 7 : i32
    %5 = arith.addi %4, %c7_i32 : i32
    %6 = arith.cmpi sle, %3, %5 : i32
    %7 = arith.extui %6 : i1 to i32
    %c0_i32_2 = arith.constant 0 : i32
    %8 = arith.cmpi ne, %7, %c0_i32_2 : i32
    scf.if %8 {
      %c0 = arith.constant 0 : index
      %c0_5 = arith.constant 0 : index
      %c0_6 = arith.constant 0 : index
      %12 = vector.load %arg5[%c0, %c0_5, %c0_6] : memref<1x8x16xf32, #tpu.memory_space<vmem>>, vector<1x8x8xf32>
      %13 = vector.shape_cast %12 : vector<1x8x8xf32> to vector<8x8xf32>
      %14 = arith.truncf %13 : vector<8x8xf32> to vector<8x8xbf16>
      %c0_7 = arith.constant 0 : index
      %c0_8 = arith.constant 0 : index
      %c8 = arith.constant 8 : index
      %15 = vector.load %arg5[%c0_7, %c0_8, %c8] : memref<1x8x16xf32, #tpu.memory_space<vmem>>, vector<1x8x8xf32>
      %16 = vector.shape_cast %15 : vector<1x8x8xf32> to vector<8x8xf32>
      %17 = arith.truncf %16 : vector<8x8xf32> to vector<8x8xbf16>
      %c0_9 = arith.constant 0 : index
      %c0_10 = arith.constant 0 : index
      %18 = vector.load %arg9[%c0_9, %c0_10] : memref<32x8xbf16, #tpu.memory_space<vmem>>, vector<32x8xbf16>
      %cst = arith.constant dense<0.000000e+00> : vector<32x8xf32>
      %19 = tpu.matmul %18, %14, %cst {dimension_numbers = #tpu.dot_dimension_numbers<[1], [1], [0], [0], [0, 0, 1, 0], [], []>} : vector<32x8xbf16>, vector<8x8xbf16>, vector<32x8xf32> -> vector<32x8xf32>
      %c8_i32_11 = arith.constant 8 : i32
      %20 = arith.muli %arg2, %c8_i32_11 : i32
      %21 = tpu.iota {dimensions = array<i32: 0>} : vector<32x8xi32>
      %c8_i32_12 = arith.constant 8 : i32
      %c0_i32_13 = arith.constant 0 : i32
      %22 = arith.cmpi eq, %c8_i32_12, %c0_i32_13 : i32
      %c1_i32 = arith.constant 1 : i32
      %23 = arith.select %22, %c1_i32, %c8_i32_12 : i32
      %24 = vector.broadcast %23 : i32 to vector<32x8xi32>
      %25 = arith.remsi %21, %24 : vector<32x8xi32>
      %c0_i32_14 = arith.constant 0 : i32
      %26 = vector.broadcast %c0_i32_14 : i32 to vector<32x8xi32>
      %27 = arith.cmpi ne, %25, %26 : vector<32x8xi32>
      %c0_i32_15 = arith.constant 0 : i32
      %28 = vector.broadcast %c0_i32_15 : i32 to vector<32x8xi32>
      %29 = arith.cmpi slt, %25, %28 : vector<32x8xi32>
      %c0_i32_16 = arith.constant 0 : i32
      %30 = arith.cmpi slt, %23, %c0_i32_16 : i32
      %31 = vector.broadcast %30 : i1 to vector<32x8xi1>
      %32 = vector.broadcast %31 : vector<32x8xi1> to vector<32x8xi1>
      %33 = arith.xori %29, %32 : vector<32x8xi1>
      %34 = arith.andi %33, %27 : vector<32x8xi1>
      %35 = vector.broadcast %23 : i32 to vector<32x8xi32>
      %36 = arith.addi %25, %35 : vector<32x8xi32>
      %37 = arith.select %34, %36, %25 : vector<32x8xi1>, vector<32x8xi32>
      %38 = vector.broadcast %20 : i32 to vector<32x8xi32>
      %39 = arith.addi %38, %37 : vector<32x8xi32>
      %c8_i32_17 = arith.constant 8 : i32
      %40 = arith.muli %arg3, %c8_i32_17 : i32
      %41 = tpu.iota {dimensions = array<i32: 1>} : vector<32x8xi32>
      %42 = vector.broadcast %40 : i32 to vector<32x8xi32>
      %43 = arith.addi %42, %41 : vector<32x8xi32>
      %44 = arith.cmpi sle, %43, %39 : vector<32x8xi32>
      %cst_18 = arith.constant -1.000000e+30 : f32
      %45 = vector.broadcast %cst_18 : f32 to vector<32x8xf32>
      %46 = arith.select %44, %19, %45 : vector<32x8xi1>, vector<32x8xf32>
      %c0_19 = arith.constant 0 : index
      %c0_20 = arith.constant 0 : index
      %47 = vector.load %arg10[%c0_19, %c0_20] : memref<32x1xf32, #tpu.memory_space<vmem>>, vector<32x1xf32>
      %cst_21 = arith.constant dense<0xFF800000> : vector<32xf32>
      %48 = vector.multi_reduction <maximumf>, %46, %cst_21 [1] : vector<32x8xf32> to vector<32xf32>
      %49 = vector.shape_cast %48 : vector<32xf32> to vector<32x1xf32>
      %50 = arith.maximumf %47, %49 : vector<32x1xf32>
      %c0_22 = arith.constant 0 : index
      %c0_23 = arith.constant 0 : index
      %51 = vector.load %arg10[%c0_22, %c0_23] : memref<32x1xf32, #tpu.memory_space<vmem>>, vector<32x1xf32>
      %52 = arith.subf %51, %50 : vector<32x1xf32>
      %53 = math.exp %52 : vector<32x1xf32>
      %54 = vector.broadcast %50 : vector<32x1xf32> to vector<32x8xf32>
      %55 = arith.subf %46, %54 : vector<32x8xf32>
      %56 = math.exp %55 : vector<32x8xf32>
      %c0_24 = arith.constant 0 : index
      %c0_25 = arith.constant 0 : index
      %57 = vector.load %arg11[%c0_24, %c0_25] : memref<32x1xf32, #tpu.memory_space<vmem>>, vector<32x1xf32>
      %58 = arith.mulf %53, %57 : vector<32x1xf32>
      %cst_26 = arith.constant dense<0.000000e+00> : vector<32xf32>
      %59 = vector.multi_reduction <add>, %56, %cst_26 [1] : vector<32x8xf32> to vector<32xf32>
      %60 = vector.shape_cast %59 : vector<32xf32> to vector<32x1xf32>
      %61 = arith.addf %58, %60 : vector<32x1xf32>
      %c0_27 = arith.constant 0 : index
      %c0_28 = arith.constant 0 : index
      %62 = vector.load %arg11[%c0_27, %c0_28] : memref<32x1xf32, #tpu.memory_space<vmem>>, vector<32x1xf32>
      tpu.vector_store %arg11[%c0_27, %c0_28], %61 {strides = array<i32>} : memref<32x1xf32, #tpu.memory_space<vmem>>, vector<32x1xf32>,
      %c0_29 = arith.constant 0 : index
      %c0_30 = arith.constant 0 : index
      %63 = vector.load %arg12[%c0_29, %c0_30] : memref<32x8xf32, #tpu.memory_space<vmem>>, vector<32x8xf32>
      %64 = vector.broadcast %53 : vector<32x1xf32> to vector<32x8xf32>
      %65 = arith.mulf %64, %63 : vector<32x8xf32>
      %66 = arith.truncf %56 : vector<32x8xf32> to vector<32x8xbf16>
      %cst_31 = arith.constant dense<0.000000e+00> : vector<32x8xf32>
      %67 = tpu.matmul %66, %17, %cst_31 {dimension_numbers = #tpu.dot_dimension_numbers<[1], [0], [0], [1], [0, 0, 1, 1], [], []>} : vector<32x8xbf16>, vector<8x8xbf16>, vector<32x8xf32> -> vector<32x8xf32>
      %68 = arith.addf %65, %67 : vector<32x8xf32>
      %c0_32 = arith.constant 0 : index
      %c0_33 = arith.constant 0 : index
      %69 = vector.load %arg12[%c0_32, %c0_33] : memref<32x8xf32, #tpu.memory_space<vmem>>, vector<32x8xf32>
      tpu.vector_store %arg12[%c0_32, %c0_33], %68 {strides = array<i32>} : memref<32x8xf32, #tpu.memory_space<vmem>>, vector<32x8xf32>,
      %c0_34 = arith.constant 0 : index
      %c0_35 = arith.constant 0 : index
      %70 = vector.load %arg10[%c0_34, %c0_35] : memref<32x1xf32, #tpu.memory_space<vmem>>, vector<32x1xf32>
      tpu.vector_store %arg10[%c0_34, %c0_35], %50 {strides = array<i32>} : memref<32x1xf32, #tpu.memory_space<vmem>>, vector<32x1xf32>,
    } else {
    }
    %c0_i32_3 = arith.constant 0 : i32
    %9 = arith.cmpi eq, %arg3, %c0_i32_3 : i32
    %10 = arith.extui %9 : i1 to i32
    %c0_i32_4 = arith.constant 0 : i32
    %11 = arith.cmpi ne, %10, %c0_i32_4 : i32
    scf.if %11 {
      %c0 = arith.constant 0 : index
      %c0_5 = arith.constant 0 : index
      %12 = vector.load %arg12[%c0, %c0_5] : memref<32x8xf32, #tpu.memory_space<vmem>>, vector<32x8xf32>
      %c0_6 = arith.constant 0 : index
      %c0_7 = arith.constant 0 : index
      %13 = vector.load %arg11[%c0_6, %c0_7] : memref<32x1xf32, #tpu.memory_space<vmem>>, vector<32x1xf32>
      %14 = tpu.reciprocal %13 {approx = true} : vector<32x1xf32> -> vector<32x1xf32>
      %15 = vector.broadcast %14 : vector<32x1xf32> to vector<32x8xf32>
      %16 = arith.mulf %12, %15 : vector<32x8xf32>
      %17 = vector.shape_cast %16 : vector<32x8xf32> to vector<4x8x8xf32>
      %18 = arith.truncf %17 : vector<4x8x8xf32> to vector<4x8x8xbf16>
      %c0_8 = arith.constant 0 : index
      %c0_9 = arith.constant 0 : index
      %c0_10 = arith.constant 0 : index
      %c0_11 = arith.constant 0 : index
      %19 = vector.load %arg8[%c0_8, %c0_9, %c0_10, %c0_11] : memref<1x4x8x8xbf16, #tpu.memory_space<vmem>>, vector<1x4x8x8xbf16>
      %20 = vector.shape_cast %19 : vector<1x4x8x8xbf16> to vector<4x8x8xbf16>
      %21 = vector.shape_cast %18 : vector<4x8x8xbf16> to vector<1x4x8x8xbf16>
      tpu.vector_store %arg8[%c0_8, %c0_9, %c0_10, %c0_11], %21 {strides = array<i32>} : memref<1x4x8x8xbf16, #tpu.memory_space<vmem>>, vector<1x4x8x8xbf16>,
    } else {
    }
    return
  }
  func.func @transform_0(%arg0: i32, %arg1: i32, %arg2: i32, %arg3: i32) -> (i32, i32, i32, i32) {
    %c0_i32 = arith.constant 0 : i32
    %c0_i32_0 = arith.constant 0 : i32
    return %arg0, %arg1, %arg2, %c0_i32 : i32, i32, i32, i32
  }
  func.func @transform_1(%arg0: i32, %arg1: i32, %arg2: i32, %arg3: i32) -> (i32, i32, i32) {
    %c0_i32 = arith.constant 0 : i32
    %c0_i32_0 = arith.constant 0 : i32
    return %arg0, %arg3, %c0_i32 : i32, i32, i32
  }
  func.func @transform_2(%arg0: i32, %arg1: i32, %arg2: i32, %arg3: i32) -> (i32, i32) {
    %c0_i32 = arith.constant 0 : i32
    %c0_i32_0 = arith.constant 0 : i32
    return %arg2, %c0_i32 : i32, i32
  }
  func.func @transform_3(%arg0: i32, %arg1: i32, %arg2: i32, %arg3: i32) -> (i32, i32) {
    %c0_i32 = arith.constant 0 : i32
    %c0_i32_0 = arith.constant 0 : i32
    return %arg2, %c0_i32 : i32, i32
  }
  func.func @transform_4(%arg0: i32, %arg1: i32, %arg2: i32, %arg3: i32) -> (i32, i32, i32, i32) {
    %c0_i32 = arith.constant 0 : i32
    %c0_i32_0 = arith.constant 0 : i32
    return %arg0, %arg1, %arg2, %c0_i32 : i32, i32, i32, i32
  }
}

module attributes {stable_mosaic.version = 11 : i64} {
  func.func @dense_mlp_kernel(%arg0: i32, %arg1: i32, %arg2: i32, %arg3: memref<1x8x32xbf16, #tpu.memory_space<vmem>>, %arg4: memref<1x8x32xbf16, #tpu.memory_space<vmem>>, %arg5: memref<1x8x32xf32, #tpu.memory_space<vmem>>, %arg6: memref<32x32xbf16, #tpu.memory_space<vmem>>, %arg7: memref<32x128xbf16, #tpu.memory_space<vmem>>, %arg8: memref<128x32xbf16, #tpu.memory_space<vmem>>, %arg9: memref<1x8x32xf32, #tpu.memory_space<vmem>>, %arg10: memref<8x32xf32, #tpu.memory_space<vmem>>) attributes {dimension_semantics = [#tpu.dimension_semantics<parallel>, #tpu.dimension_semantics<parallel>, #tpu.dimension_semantics<arbitrary>], iteration_bounds = array<i64: 2, 1, 1>, scalar_prefetch = 0 : i64, scratch_operands = 1 : i64, tpu.core_type = #tpu.core_type<tc>, window_params = [{transform_indices = @transform_0, window_bounds = array<i64: 1, 8, 32>}, {transform_indices = @transform_1, window_bounds = array<i64: 1, 8, 32>}, {transform_indices = @transform_2, window_bounds = array<i64: 1, 8, 32>}, {pipeline_mode = #tpu.pipeline_mode<synchronous>, transform_indices = @transform_3, window_bounds = array<i64: 32, 32>}, {transform_indices = @transform_4, window_bounds = array<i64: 32, 128>}, {transform_indices = @transform_5, window_bounds = array<i64: 128, 32>}, {transform_indices = @transform_6, window_bounds = array<i64: 1, 8, 32>}]} {
    %c0_i32 = arith.constant 0 : i32
    %0 = arith.cmpi eq, %arg2, %c0_i32 : i32
    %1 = arith.extui %0 : i1 to i32
    %c0_i32_0 = arith.constant 0 : i32
    %2 = arith.cmpi ne, %1, %c0_i32_0 : i32
    scf.if %2 {
      %c0_17 = arith.constant 0 : index
      %c0_18 = arith.constant 0 : index
      %c0_19 = arith.constant 0 : index
      %24 = vector.load %arg4[%c0_17, %c0_18, %c0_19] : memref<1x8x32xbf16, #tpu.memory_space<vmem>>, vector<1x8x32xbf16>
      %25 = vector.shape_cast %24 : vector<1x8x32xbf16> to vector<8x32xbf16>
      %c0_20 = arith.constant 0 : index
      %c0_21 = arith.constant 0 : index
      %26 = vector.load %arg6[%c0_20, %c0_21] : memref<32x32xbf16, #tpu.memory_space<vmem>>, vector<32x32xbf16>
      %cst_22 = arith.constant dense<0.000000e+00> : vector<8x32xf32>
      %27 = tpu.matmul %25, %26, %cst_22 {dimension_numbers = #tpu.dot_dimension_numbers<[1], [0], [0], [1], [0, 0, 1, 1], [], []>} : vector<8x32xbf16>, vector<32x32xbf16>, vector<8x32xf32> -> vector<8x32xf32>
      %c0_23 = arith.constant 0 : index
      %c0_24 = arith.constant 0 : index
      %c0_25 = arith.constant 0 : index
      %28 = vector.load %arg5[%c0_23, %c0_24, %c0_25] : memref<1x8x32xf32, #tpu.memory_space<vmem>>, vector<1x8x32xf32>
      %29 = vector.shape_cast %28 : vector<1x8x32xf32> to vector<8x32xf32>
      %30 = arith.addf %29, %27 : vector<8x32xf32>
      %c0_26 = arith.constant 0 : index
      %c0_27 = arith.constant 0 : index
      %31 = vector.load %arg10[%c0_26, %c0_27] : memref<8x32xf32, #tpu.memory_space<vmem>>, vector<8x32xf32>
      tpu.vector_store %arg10[%c0_26, %c0_27], %30 {strides = array<i32>} : memref<8x32xf32, #tpu.memory_space<vmem>>, vector<8x32xf32>,
    } else {
    }
    %c0 = arith.constant 0 : index
    %c0_1 = arith.constant 0 : index
    %c0_2 = arith.constant 0 : index
    %3 = vector.load %arg3[%c0, %c0_1, %c0_2] : memref<1x8x32xbf16, #tpu.memory_space<vmem>>, vector<1x8x32xbf16>
    %4 = vector.shape_cast %3 : vector<1x8x32xbf16> to vector<8x32xbf16>
    %c0_3 = arith.constant 0 : index
    %c0_4 = arith.constant 0 : index
    %5 = vector.load %arg7[%c0_3, %c0_4] : memref<32x128xbf16, #tpu.memory_space<vmem>>, vector<32x128xbf16>
    %cst = arith.constant dense<0.000000e+00> : vector<8x128xf32>
    %6 = tpu.matmul %4, %5, %cst {dimension_numbers = #tpu.dot_dimension_numbers<[1], [0], [0], [1], [0, 0, 1, 1], [], []>} : vector<8x32xbf16>, vector<32x128xbf16>, vector<8x128xf32> -> vector<8x128xf32>
    %cst_5 = arith.constant 5.000000e-01 : f32
    %7 = vector.broadcast %cst_5 : f32 to vector<8x128xf32>
    %8 = arith.mulf %7, %6 : vector<8x128xf32>
    %cst_6 = arith.constant 0.707106769 : f32
    %9 = vector.broadcast %cst_6 : f32 to vector<8x128xf32>
    %10 = arith.mulf %6, %9 : vector<8x128xf32>
    %11 = math.erf %10 : vector<8x128xf32>
    %cst_7 = arith.constant 1.000000e+00 : f32
    %12 = vector.broadcast %cst_7 : f32 to vector<8x128xf32>
    %13 = arith.addf %12, %11 : vector<8x128xf32>
    %14 = arith.mulf %8, %13 : vector<8x128xf32>
    %c0_8 = arith.constant 0 : index
    %c0_9 = arith.constant 0 : index
    %15 = vector.load %arg10[%c0_8, %c0_9] : memref<8x32xf32, #tpu.memory_space<vmem>>, vector<8x32xf32>
    %16 = arith.truncf %14 : vector<8x128xf32> to vector<8x128xbf16>
    %c0_10 = arith.constant 0 : index
    %c0_11 = arith.constant 0 : index
    %17 = vector.load %arg8[%c0_10, %c0_11] : memref<128x32xbf16, #tpu.memory_space<vmem>>, vector<128x32xbf16>
    %cst_12 = arith.constant dense<0.000000e+00> : vector<8x32xf32>
    %18 = tpu.matmul %16, %17, %cst_12 {dimension_numbers = #tpu.dot_dimension_numbers<[1], [0], [0], [1], [0, 0, 1, 1], [], []>} : vector<8x128xbf16>, vector<128x32xbf16>, vector<8x32xf32> -> vector<8x32xf32>
    %19 = arith.addf %15, %18 : vector<8x32xf32>
    %c0_13 = arith.constant 0 : index
    %c0_14 = arith.constant 0 : index
    %20 = vector.load %arg10[%c0_13, %c0_14] : memref<8x32xf32, #tpu.memory_space<vmem>>, vector<8x32xf32>
    tpu.vector_store %arg10[%c0_13, %c0_14], %19 {strides = array<i32>} : memref<8x32xf32, #tpu.memory_space<vmem>>, vector<8x32xf32>,
    %c0_i32_15 = arith.constant 0 : i32
    %21 = arith.cmpi eq, %arg2, %c0_i32_15 : i32
    %22 = arith.extui %21 : i1 to i32
    %c0_i32_16 = arith.constant 0 : i32
    %23 = arith.cmpi ne, %22, %c0_i32_16 : i32
    scf.if %23 {
      %c0_17 = arith.constant 0 : index
      %c0_18 = arith.constant 0 : index
      %24 = vector.load %arg10[%c0_17, %c0_18] : memref<8x32xf32, #tpu.memory_space<vmem>>, vector<8x32xf32>
      %c0_19 = arith.constant 0 : index
      %c0_20 = arith.constant 0 : index
      %c0_21 = arith.constant 0 : index
      %25 = vector.load %arg9[%c0_19, %c0_20, %c0_21] : memref<1x8x32xf32, #tpu.memory_space<vmem>>, vector<1x8x32xf32>
      %26 = vector.shape_cast %25 : vector<1x8x32xf32> to vector<8x32xf32>
      %27 = vector.shape_cast %24 : vector<8x32xf32> to vector<1x8x32xf32>
      tpu.vector_store %arg9[%c0_19, %c0_20, %c0_21], %27 {strides = array<i32>} : memref<1x8x32xf32, #tpu.memory_space<vmem>>, vector<1x8x32xf32>,
    } else {
    }
    return
  }
  func.func @transform_0(%arg0: i32, %arg1: i32, %arg2: i32) -> (i32, i32, i32) {
    %c0_i32 = arith.constant 0 : i32
    %c0_i32_0 = arith.constant 0 : i32
    return %arg0, %arg1, %c0_i32 : i32, i32, i32
  }
  func.func @transform_1(%arg0: i32, %arg1: i32, %arg2: i32) -> (i32, i32, i32) {
    %c0_i32 = arith.constant 0 : i32
    %c0_i32_0 = arith.constant 0 : i32
    return %arg0, %arg1, %c0_i32 : i32, i32, i32
  }
  func.func @transform_2(%arg0: i32, %arg1: i32, %arg2: i32) -> (i32, i32, i32) {
    %c0_i32 = arith.constant 0 : i32
    %c0_i32_0 = arith.constant 0 : i32
    return %arg0, %arg1, %c0_i32 : i32, i32, i32
  }
  func.func @transform_3(%arg0: i32, %arg1: i32, %arg2: i32) -> (i32, i32) {
    %c0_i32 = arith.constant 0 : i32
    %c0_i32_0 = arith.constant 0 : i32
    %c0_i32_1 = arith.constant 0 : i32
    return %c0_i32, %c0_i32_0 : i32, i32
  }
  func.func @transform_4(%arg0: i32, %arg1: i32, %arg2: i32) -> (i32, i32) {
    %c0_i32 = arith.constant 0 : i32
    %c0_i32_0 = arith.constant 0 : i32
    return %c0_i32, %arg2 : i32, i32
  }
  func.func @transform_5(%arg0: i32, %arg1: i32, %arg2: i32) -> (i32, i32) {
    %c0_i32 = arith.constant 0 : i32
    %c0_i32_0 = arith.constant 0 : i32
    return %arg2, %c0_i32 : i32, i32
  }
  func.func @transform_6(%arg0: i32, %arg1: i32, %arg2: i32) -> (i32, i32, i32) {
    %c0_i32 = arith.constant 0 : i32
    %c0_i32_0 = arith.constant 0 : i32
    return %arg0, %arg1, %c0_i32 : i32, i32, i32
  }
}

</mosaic_0001>

<llo_original>
// kernel: decoder_layer.3
$region0: #{decoder_layer.3}
  #allocation0 [shape = 'u32[]', space=smem, size = 0x4, offset = 0x4, fixed_abs, tag = 'smem constant byte address 0x4 - core index']
  #allocation1 [shape = 'u32[72,128]{1,0:T(1,128)}', space=vmem, size = 0x9000, scoped, tag = 'internal scratch']
  %s0 = inlined_call_operand.vmem [shape: f32[2,8,32], index: 0, kind: input, shape index: {}]
  %s1 = inlined_call_operand.vmem [shape: f32[1,32], index: 1, kind: input, shape index: {}]
  %s2 = inlined_call_operand.vmem [shape: f32[1,32], index: 2, kind: input, shape index: {}]
  %s3 = inlined_call_operand.vmem [shape: bf16[32,32], index: 3, kind: input, shape index: {}]
  %s4 = inlined_call_operand.vmem [shape: bf16[32,8], index: 4, kind: input, shape index: {}]
  %s5 = inlined_call_operand.vmem [shape: bf16[32,8], index: 5, kind: input, shape index: {}]
  %s6 = inlined_call_operand.hbm [shape: f32[8,8], index: 6, kind: input, shape index: {}]
  %s7 = inlined_call_operand.hbm [shape: f32[8,8], index: 7, kind: input, shape index: {}]
  %s8 = inlined_call_operand.vmem [shape: bf16[2,8,32], index: 8, kind: output, shape index: {0}]
  %s9 = inlined_call_operand.vmem [shape: bf16[2,8,32], index: 9, kind: output, shape index: {1}]
  %s10 = inlined_call_operand.vmem [shape: f32[2,8,16], index: 10, kind: output, shape index: {2}]
  %11 = xla_tuple %s8, %s9, %s10
  %s12 = sld [smem:[#allocation0]]
  $region89: #{decoder_layer.3} parent=0
    _
  %s14 = ssub.s32 1, %s12
  %s15 = scalar_select 0, %s14, %s12
  $region1: #{decoder_layer.3} parent=0
    #allocation2 [shape = 'u8[4096]{0}', space=vmem, size = 0x1000, scoped, tag = 'input window, operand 6, single buffered']
    #allocation3 [shape = 's32[2]{0}', space=sflag, size = 0x8, scoped, tag = 'scoped memory for decoder_layer.3']
    #allocation4 [shape = 'u8[4096]{0}', space=vmem, size = 0x1000, scoped, tag = 'input window, operand 7, single buffered']
    #allocation5 [shape = 's32[1]{0}', space=sflag, size = 0x4, scoped, tag = 'scoped memory for decoder_layer.3']
    %16 = vsyncpa [#allocation3], 0
    %17 = vsyncpa [#allocation5], 0
    loop: start=0, step=1, limit=4
    $region2: #{decoder_layer.3} parent=1 // loop_pre_header
      _
    $region3: #{decoder_layer.3} parent=1 // loop_header
      %s19 = sphi 0, %s23
      %p20 = scmp.ge.s32.totalorder %s19, 4
      %s26 = sphi 0, %s38
      %s27 = sphi 0, %s34
      %s28 = sphi 0, %s26
      %s29 = sphi 0, %s27
      %s30 = sphi 0, %s28
      %s31 = sphi 0, %s29
      %s43 = sphi 0, %s45
      %s46 = sphi 0, %s43
      %s47 = sphi 0, %s46
      %s63 = sphi 0, %s47
      %s67 = sphi 0, %s67
      %s69 = sphi 0, %s67
      %s70 = sphi 0, %s69
      %s84 = sphi 0, %s70
      %s88 = sphi 0, %s88
      %s90 = sphi 0, %s88
      %s91 = sphi 0, %s90
      %s105 = sphi 0, %s91
      %s109 = sphi 0, %s109
      %s111 = sphi 0, %s109
      %s112 = sphi 0, %s111
      %s126 = sphi 0, %s112
      %s130 = sphi 0, %s130
      %s132 = sphi 0, %s130
      %s133 = sphi 0, %s132
      %s147 = sphi 0, %s133
      %s151 = sphi 0, %s151
      %s153 = sphi 0, %s151
      %s154 = sphi 0, %s153
      %s168 = sphi 0, %s154
      %s174 = sphi 0, %s176
      %s177 = sphi 0, %s174
      %s178 = sphi 0, %s177
      %s194 = sphi 0, %s178
      %s200 = sphi 0, %s202
      %s203 = sphi 0, %s200
      %s204 = sphi 0, %s203
      %s220 = sphi 0, %s204
      %s228 = sphi 0, %s230
      %s231 = sphi 0, %s228
      %s232 = sphi 0, %s231
      %s248 = sphi 0, %s232
      %s256 = sphi 0, %s258
      %s259 = sphi 0, %s256
      %s260 = sphi 0, %s259
      %s276 = sphi 0, %s260
      %s284 = sphi 0, %s286
      %s287 = sphi 0, %s284
      %s288 = sphi 0, %s287
      %s304 = sphi 0, %s288
    $region4: #{decoder_layer.3} parent=1 // loop_header_branch
      %22 = sbr.rel (%p20) target = $region8
    $region5: #{decoder_layer.3} parent=1 // loop_body
      %s24 = ssub.s32 %s19, 1
      %s25 = ssub.s32 %s19, 2
      %s32 = sadd.s32 1, %s27
      %p33 = scmp.ge.s32.totalorder %s32, 1
      %s34 = scalar_select %p33, 0, %s32
      %s35 = sadd.s32 1, %s26
      %s36 = scalar_select %p33, %s35, %s26
      %p37 = scmp.ge.s32.totalorder %s36, 2
      %s38 = scalar_select %p37, 0, %s36
      %s39 = ssub.s32 %s26, %s38
      %s40 = ssub.s32 %s27, %s34
      %s41 = sor.u32 %s39, %s40
      %p42 = scmp.eq.s32.totalorder %s41, 0
      %s44 = sadd.s32 %s43, 1
      %s45 = scalar_select %p42, %s43, %s44
      %p48 = pneg %p42
      %p49 = scmp.eq.s32.totalorder %s19, 1
      %p50 = por %p48, %p49
      %p51 = scmp.ne.s32.totalorder %s43, %s46
      %p52 = scmp.eq.s32.totalorder %s19, 0
      %p53 = por %p51, %p52
      %p54 = scmp.ne.s32.totalorder %s43, %s46
      %p55 = scmp.eq.s32.totalorder %s24, 1
      %p56 = por %p54, %p55
      %p57 = scmp.ne.s32.totalorder %s46, %s47
      %p58 = scmp.eq.s32.totalorder %s24, 0
      %p59 = por %p57, %p58
      %p60 = scmp.ne.s32.totalorder %s46, %s47
      %p61 = scmp.eq.s32.totalorder %s25, 1
      %p62 = por %p60, %p61
      %p64 = scmp.ne.s32.totalorder %s47, %s63
      %p65 = scmp.eq.s32.totalorder %s25, 0
      %p66 = por %p64, %p65
      %s68 = sadd.s32 %s67, 1
      %p71 = scmp.eq.s32.totalorder %s19, 1
      %p72 = scmp.ne.s32.totalorder %s67, %s69
      %p73 = scmp.eq.s32.totalorder %s19, 0
      %p74 = por %p72, %p73
      %p75 = scmp.ne.s32.totalorder %s67, %s69
      %p76 = scmp.eq.s32.totalorder %s24, 1
      %p77 = por %p75, %p76
      %p78 = scmp.ne.s32.totalorder %s69, %s70
      %p79 = scmp.eq.s32.totalorder %s24, 0
      %p80 = por %p78, %p79
      %p81 = scmp.ne.s32.totalorder %s69, %s70
      %p82 = scmp.eq.s32.totalorder %s25, 1
      %p83 = por %p81, %p82
      %p85 = scmp.ne.s32.totalorder %s70, %s84
      %p86 = scmp.eq.s32.totalorder %s25, 0
      %p87 = por %p85, %p86
      %s89 = sadd.s32 %s88, 1
      %p92 = scmp.eq.s32.totalorder %s19, 1
      %p93 = scmp.ne.s32.totalorder %s88, %s90
      %p94 = scmp.eq.s32.totalorder %s19, 0
      %p95 = por %p93, %p94
      %p96 = scmp.ne.s32.totalorder %s88, %s90
      %p97 = scmp.eq.s32.totalorder %s24, 1
      %p98 = por %p96, %p97
      %p99 = scmp.ne.s32.totalorder %s90, %s91
      %p100 = scmp.eq.s32.totalorder %s24, 0
      %p101 = por %p99, %p100
      %p102 = scmp.ne.s32.totalorder %s90, %s91
      %p103 = scmp.eq.s32.totalorder %s25, 1
      %p104 = por %p102, %p103
      %p106 = scmp.ne.s32.totalorder %s91, %s105
      %p107 = scmp.eq.s32.totalorder %s25, 0
      %p108 = por %p106, %p107
      %s110 = sadd.s32 %s109, 1
      %p113 = scmp.eq.s32.totalorder %s19, 1
      %p114 = scmp.ne.s32.totalorder %s109, %s111
      %p115 = scmp.eq.s32.totalorder %s19, 0
      %p116 = por %p114, %p115
      %p117 = scmp.ne.s32.totalorder %s109, %s111
      %p118 = scmp.eq.s32.totalorder %s24, 1
      %p119 = por %p117, %p118
      %p120 = scmp.ne.s32.totalorder %s111, %s112
      %p121 = scmp.eq.s32.totalorder %s24, 0
      %p122 = por %p120, %p121
      %p123 = scmp.ne.s32.totalorder %s111, %s112
      %p124 = scmp.eq.s32.totalorder %s25, 1
      %p125 = por %p123, %p124
      %p127 = scmp.ne.s32.totalorder %s112, %s126
      %p128 = scmp.eq.s32.totalorder %s25, 0
      %p129 = por %p127, %p128
      %s131 = sadd.s32 %s130, 1
      %p134 = scmp.eq.s32.totalorder %s19, 1
      %p135 = scmp.ne.s32.totalorder %s130, %s132
      %p136 = scmp.eq.s32.totalorder %s19, 0
      %p137 = por %p135, %p136
      %p138 = scmp.ne.s32.totalorder %s130, %s132
      %p139 = scmp.eq.s32.totalorder %s24, 1
      %p140 = por %p138, %p139
      %p141 = scmp.ne.s32.totalorder %s132, %s133
      %p142 = scmp.eq.s32.totalorder %s24, 0
      %p143 = por %p141, %p142
      %p144 = scmp.ne.s32.totalorder %s132, %s133
      %p145 = scmp.eq.s32.totalorder %s25, 1
      %p146 = por %p144, %p145
      %p148 = scmp.ne.s32.totalorder %s133, %s147
      %p149 = scmp.eq.s32.totalorder %s25, 0
      %p150 = por %p148, %p149
      %s152 = sadd.s32 %s151, 1
      %p155 = scmp.eq.s32.totalorder %s19, 1
      %p156 = scmp.ne.s32.totalorder %s151, %s153
      %p157 = scmp.eq.s32.totalorder %s19, 0
      %p158 = por %p156, %p157
      %p159 = scmp.ne.s32.totalorder %s151, %s153
      %p160 = scmp.eq.s32.totalorder %s24, 1
      %p161 = por %p159, %p160
      %p162 = scmp.ne.s32.totalorder %s153, %s154
      %p163 = scmp.eq.s32.totalorder %s24, 0
      %p164 = por %p162, %p163
      %p165 = scmp.ne.s32.totalorder %s153, %s154
      %p166 = scmp.eq.s32.totalorder %s25, 1
      %p167 = por %p165, %p166
      %p169 = scmp.ne.s32.totalorder %s154, %s168
      %p170 = scmp.eq.s32.totalorder %s25, 0
      %p171 = por %p169, %p170
      %s172 = ssub.s32 %s27, %s34
      %p173 = scmp.eq.s32.totalorder %s172, 0
      %s175 = sadd.s32 %s174, 1
      %s176 = scalar_select %p173, %s174, %s175
      %p179 = pneg %p173
      %p180 = scmp.eq.s32.totalorder %s19, 1
      %p181 = por %p179, %p180
      %p182 = scmp.ne.s32.totalorder %s174, %s177
      %p183 = scmp.eq.s32.totalorder %s19, 0
      %p184 = por %p182, %p183
      %p185 = scmp.ne.s32.totalorder %s174, %s177
      %p186 = scmp.eq.s32.totalorder %s24, 1
      %p187 = por %p185, %p186
      %p188 = scmp.ne.s32.totalorder %s177, %s178
      %p189 = scmp.eq.s32.totalorder %s24, 0
      %p190 = por %p188, %p189
      %p191 = scmp.ne.s32.totalorder %s177, %s178
      %p192 = scmp.eq.s32.totalorder %s25, 1
      %p193 = por %p191, %p192
      %p195 = scmp.ne.s32.totalorder %s178, %s194
      %p196 = scmp.eq.s32.totalorder %s25, 0
      %p197 = por %p195, %p196
      %s198 = ssub.s32 %s27, %s34
      %p199 = scmp.eq.s32.totalorder %s198, 0
      %s201 = sadd.s32 %s200, 1
      %s202 = scalar_select %p199, %s200, %s201
      %p205 = pneg %p199
      %p206 = scmp.eq.s32.totalorder %s19, 1
      %p207 = por %p205, %p206
      %p208 = scmp.ne.s32.totalorder %s200, %s203
      %p209 = scmp.eq.s32.totalorder %s19, 0
      %p210 = por %p208, %p209
      %p211 = scmp.ne.s32.totalorder %s200, %s203
      %p212 = scmp.eq.s32.totalorder %s24, 1
      %p213 = por %p211, %p212
      %p214 = scmp.ne.s32.totalorder %s203, %s204
      %p215 = scmp.eq.s32.totalorder %s24, 0
      %p216 = por %p214, %p215
      %p217 = scmp.ne.s32.totalorder %s203, %s204
      %p218 = scmp.eq.s32.totalorder %s25, 1
      %p219 = por %p217, %p218
      %p221 = scmp.ne.s32.totalorder %s204, %s220
      %p222 = scmp.eq.s32.totalorder %s25, 0
      %p223 = por %p221, %p222
      %s224 = ssub.s32 %s26, %s38
      %s225 = ssub.s32 %s27, %s34
      %s226 = sor.u32 %s224, %s225
      %p227 = scmp.eq.s32.totalorder %s226, 0
      %s229 = sadd.s32 %s228, 1
      %s230 = scalar_select %p227, %s228, %s229
      %p233 = pneg %p227
      %p234 = scmp.eq.s32.totalorder %s19, 1
      %p235 = por %p233, %p234
      %p236 = scmp.ne.s32.totalorder %s228, %s231
      %p237 = scmp.eq.s32.totalorder %s19, 0
      %p238 = por %p236, %p237
      %p239 = scmp.ne.s32.totalorder %s228, %s231
      %p240 = scmp.eq.s32.totalorder %s24, 1
      %p241 = por %p239, %p240
      %p242 = scmp.ne.s32.totalorder %s231, %s232
      %p243 = scmp.eq.s32.totalorder %s24, 0
      %p244 = por %p242, %p243
      %p245 = scmp.ne.s32.totalorder %s231, %s232
      %p246 = scmp.eq.s32.totalorder %s25, 1
      %p247 = por %p245, %p246
      %p249 = scmp.ne.s32.totalorder %s232, %s248
      %p250 = scmp.eq.s32.totalorder %s25, 0
      %p251 = por %p249, %p250
      %s252 = ssub.s32 %s26, %s38
      %s253 = ssub.s32 %s27, %s34
      %s254 = sor.u32 %s252, %s253
      %p255 = scmp.eq.s32.totalorder %s254, 0
      %s257 = sadd.s32 %s256, 1
      %s258 = scalar_select %p255, %s256, %s257
      %p261 = pneg %p255
      %p262 = scmp.eq.s32.totalorder %s19, 1
      %p263 = por %p261, %p262
      %p264 = scmp.ne.s32.totalorder %s256, %s259
      %p265 = scmp.eq.s32.totalorder %s19, 0
      %p266 = por %p264, %p265
      %p267 = scmp.ne.s32.totalorder %s256, %s259
      %p268 = scmp.eq.s32.totalorder %s24, 1
      %p269 = por %p267, %p268
      %p270 = scmp.ne.s32.totalorder %s259, %s260
      %p271 = scmp.eq.s32.totalorder %s24, 0
      %p272 = por %p270, %p271
      %p273 = scmp.ne.s32.totalorder %s259, %s260
      %p274 = scmp.eq.s32.totalorder %s25, 1
      %p275 = por %p273, %p274
      %p277 = scmp.ne.s32.totalorder %s260, %s276
      %p278 = scmp.eq.s32.totalorder %s25, 0
      %p279 = por %p277, %p278
      %s280 = ssub.s32 %s26, %s38
      %s281 = ssub.s32 %s27, %s34
      %s282 = sor.u32 %s280, %s281
      %p283 = scmp.eq.s32.totalorder %s282, 0
      %s285 = sadd.s32 %s284, 1
      %s286 = scalar_select %p283, %s284, %s285
      %p289 = pneg %p283
      %p290 = scmp.eq.s32.totalorder %s19, 1
      %p291 = por %p289, %p290
      %p292 = scmp.ne.s32.totalorder %s284, %s287
      %p293 = scmp.eq.s32.totalorder %s19, 0
      %p294 = por %p292, %p293
      %p295 = scmp.ne.s32.totalorder %s284, %s287
      %p296 = scmp.eq.s32.totalorder %s24, 1
      %p297 = por %p295, %p296
      %p298 = scmp.ne.s32.totalorder %s287, %s288
      %p299 = scmp.eq.s32.totalorder %s24, 0
      %p300 = por %p298, %p299
      %p301 = scmp.ne.s32.totalorder %s287, %s288
      %p302 = scmp.eq.s32.totalorder %s25, 1
      %p303 = por %p301, %p302
      %p305 = scmp.ne.s32.totalorder %s288, %s304
      %p306 = scmp.eq.s32.totalorder %s25, 0
      %p307 = por %p305, %p306
      %p308 = scmp.le.s32.totalorder 1, %s19
      %p309 = scmp.lt.s32.totalorder %s19, 3
      %p310 = pnand %p308, %p309
      %p311 = pneg %p310
      // Predicated region
      $region9: #{decoder_layer.3} parent=5 // pred_check
        _
      $region10: #{decoder_layer.3} parent=5 // pred_check_branch
        %313 = sbr.rel (%p310) target = $region12
      $region11: #{decoder_layer.3} parent=5 // pred_region
        %s314 = ssub.s32 %s19, 1
        // Predicated region
        $region13: #{decoder_layer.3} parent=11 // pred_check
          %p315 = pneg %p80
        $region14: #{decoder_layer.3} parent=11 // pred_check_branch
          %317 = sbr.rel (%p315) target = $region16
        $region15: #{decoder_layer.3} parent=11 // pred_region
          _
        $region16: #{decoder_layer.3} parent=11 // pred_fallthru
          _
        // Predicated region
        $region17: #{decoder_layer.3} parent=11 // pred_check
          %p318 = pneg %p101
        $region18: #{decoder_layer.3} parent=11 // pred_check_branch
          %320 = sbr.rel (%p318) target = $region20
        $region19: #{decoder_layer.3} parent=11 // pred_region
          _
        $region20: #{decoder_layer.3} parent=11 // pred_fallthru
          _
        // Predicated region
        $region21: #{decoder_layer.3} parent=11 // pred_check
          %p321 = pneg %p122
        $region22: #{decoder_layer.3} parent=11 // pred_check_branch
          %323 = sbr.rel (%p321) target = $region24
        $region23: #{decoder_layer.3} parent=11 // pred_region
          _
        $region24: #{decoder_layer.3} parent=11 // pred_fallthru
          _
        // Predicated region
        $region25: #{decoder_layer.3} parent=11 // pred_check
          %p324 = pneg %p143
        $region26: #{decoder_layer.3} parent=11 // pred_check_branch
          %326 = sbr.rel (%p324) target = $region28
        $region27: #{decoder_layer.3} parent=11 // pred_region
          _
        $region28: #{decoder_layer.3} parent=11 // pred_fallthru
          _
        // Predicated region
        $region29: #{decoder_layer.3} parent=11 // pred_check
          %p327 = pneg %p164
        $region30: #{decoder_layer.3} parent=11 // pred_check_branch
          %329 = sbr.rel (%p327) target = $region32
        $region31: #{decoder_layer.3} parent=11 // pred_region
          _
        $region32: #{decoder_layer.3} parent=11 // pred_fallthru
          _
        // Predicated region
        $region33: #{decoder_layer.3} parent=11 // pred_check
          %p330 = pneg %p190
        $region34: #{decoder_layer.3} parent=11 // pred_check_branch
          %332 = sbr.rel (%p330) target = $region36
        $region35: #{decoder_layer.3} parent=11 // pred_region
          %334 = vsyncadd [#allocation3], 0
          %s335 = smul.addr %s29, 8
          %s336 = scalar_lea.hbm %s6, %s335
          %s338 = sshll.u32 %s336, 4
          %s339 = int_to_ptr.hbm [resolvable:$true] %s338
          %s340 = sshll.u32 [#allocation2], 4
          %s341 = int_to_ptr.vmem [resolvable:$true] %s340
          %343 = dma.hbm_to_vmem [thread:$0]  %s339, 128, %s341, [#allocation3]
        $region36: #{decoder_layer.3} parent=11 // pred_fallthru
          _
        // Predicated region
        $region37: #{decoder_layer.3} parent=11 // pred_check
          %p344 = pneg %p216
        $region38: #{decoder_layer.3} parent=11 // pred_check_branch
          %346 = sbr.rel (%p344) target = $region40
        $region39: #{decoder_layer.3} parent=11 // pred_region
          %348 = vsyncadd [#allocation5], 0
          %s349 = smul.addr %s29, 8
          %s350 = scalar_lea.hbm %s7, %s349
          %s352 = sshll.u32 %s350, 4
          %s353 = int_to_ptr.hbm [resolvable:$true] %s352
          %s354 = sshll.u32 [#allocation4], 4
          %s355 = int_to_ptr.vmem [resolvable:$true] %s354
          %357 = dma.hbm_to_vmem [thread:$0]  %s353, 128, %s355, [#allocation5]
        $region40: #{decoder_layer.3} parent=11 // pred_fallthru
          _
      $region12: #{decoder_layer.3} parent=5 // pred_fallthru
        _
      %p358 = scmp.lt.s32.totalorder %s19, 2
      // Predicated region
      $region41: #{decoder_layer.3} parent=5 // pred_check
        %p359 = pneg %p358
      $region42: #{decoder_layer.3} parent=5 // pred_check_branch
        %361 = sbr.rel (%p359) target = $region44
      $region43: #{decoder_layer.3} parent=5 // pred_region
        // Predicated region
        $region45: #{decoder_layer.3} parent=43 // pred_check
          %p362 = pneg %p53
        $region46: #{decoder_layer.3} parent=43 // pred_check_branch
          %364 = sbr.rel (%p362) target = $region48
        $region47: #{decoder_layer.3} parent=43 // pred_region
          %p365 = scmp.lt.s32.totalorder %s26, 1
          %s366 = scalar_select %p365, %s26, 1
          %p367 = scmp.lt.s32.totalorder %s27, 0
          %s368 = scalar_select %p367, %s27, 0
          %s369 = sadd.s32 %s368, %s366
          %s370 = smul.addr %s369, 8
          %s371 = scalar_lea.vmem %s0, %s370
        $region48: #{decoder_layer.3} parent=43 // pred_fallthru
          _
      $region44: #{decoder_layer.3} parent=5 // pred_fallthru
        _
      %p372 = scmp.le.s32.totalorder 1, %s19
      %p373 = scmp.lt.s32.totalorder %s19, 3
      %p374 = pnand %p372, %p373
      %p375 = pneg %p374
      // Predicated region
      $region49: #{decoder_layer.3} parent=5 // pred_check
        _
      $region50: #{decoder_layer.3} parent=5 // pred_check_branch
        %377 = sbr.rel (%p374) target = $region52
      $region51: #{decoder_layer.3} parent=5 // pred_region
        %s378 = ssub.s32 %s19, 1
        // Predicated region
        $region53: #{decoder_layer.3} parent=51 // pred_check
          %p379 = pneg %p190
        $region54: #{decoder_layer.3} parent=51 // pred_check_branch
          %381 = sbr.rel (%p379) target = $region56
        $region55: #{decoder_layer.3} parent=51 // pred_region
          %383 = dma.done [#allocation3], 128
        $region56: #{decoder_layer.3} parent=51 // pred_fallthru
          _
        // Predicated region
        $region57: #{decoder_layer.3} parent=51 // pred_check
          %p384 = pneg %p216
        $region58: #{decoder_layer.3} parent=51 // pred_check_branch
          %386 = sbr.rel (%p384) target = $region60
        $region59: #{decoder_layer.3} parent=51 // pred_region
          %388 = dma.done [#allocation5], 128
        $region60: #{decoder_layer.3} parent=51 // pred_fallthru
          _
        %p389 = scmp.lt.s32.totalorder %s28, 1
        %s390 = scalar_select %p389, %s28, 1
        %p391 = scmp.lt.s32.totalorder %s29, 0
        %s392 = scalar_select %p391, %s29, 0
        %s393 = sadd.s32 %s392, %s390
        %s394 = smul.addr %s393, 8
        %s395 = scalar_lea.vmem %s0, %s394
        %p396 = pneg %p59
        %p397 = pneg %p56
        %p398 = pneg %p80
        %p399 = pneg %p77
        %p400 = pneg %p101
        %p401 = pneg %p98
        %p402 = pneg %p122
        %p403 = pneg %p119
        %p404 = pneg %p143
        %p405 = pneg %p140
        %p406 = pneg %p164
        %p407 = pneg %p161
        %p408 = pneg %p190
        %p409 = pneg %p187
        %p410 = pneg %p216
        %p411 = pneg %p213
        %p412 = pneg %p244
        %p413 = pneg %p241
        %p414 = scmp.lt.s32.totalorder %s28, 1
        %s415 = scalar_select %p414, %s28, 1
        %p416 = scmp.lt.s32.totalorder %s29, 0
        %s417 = scalar_select %p416, %s29, 0
        %s418 = sadd.s32 %s417, %s415
        %s419 = smul.addr %s418, 4
        %s420 = scalar_lea.vmem %s8, %s419
        %p421 = pneg %p272
        %p422 = pneg %p269
        %p423 = scmp.lt.s32.totalorder %s28, 1
        %s424 = scalar_select %p423, %s28, 1
        %p425 = scmp.lt.s32.totalorder %s29, 0
        %s426 = scalar_select %p425, %s29, 0
        %s427 = sadd.s32 %s426, %s424
        %s428 = smul.addr %s427, 4
        %s429 = scalar_lea.vmem %s9, %s428
        %p430 = pneg %p300
        %p431 = pneg %p297
        %p432 = scmp.lt.s32.totalorder %s28, 1
        %s433 = scalar_select %p432, %s28, 1
        %p434 = scmp.lt.s32.totalorder %s29, 0
        %s435 = scalar_select %p434, %s29, 0
        %s436 = sadd.s32 %s435, %s433
        %s437 = smul.addr %s436, 8
        %s438 = scalar_lea.vmem %s10, %s437
        %p439 = scmp.lt.s32.totalorder %s28, 1
        %s440 = scalar_select %p439, %s28, 1
        %p441 = scmp.lt.s32.totalorder %s29, 0
        %s442 = scalar_select %p441, %s29, 0
        %s443 = sadd.s32 %s442, %s440
        %s444 = smul.addr %s443, 8
        %s445 = scalar_lea.vmem %s0, %s444
        %p446 = scmp.lt.s32.totalorder %s28, 1
        %s447 = scalar_select %p446, %s28, 1
        %p448 = scmp.lt.s32.totalorder %s29, 0
        %s449 = scalar_select %p448, %s29, 0
        %s450 = sadd.s32 %s449, %s447
        %s451 = smul.addr %s450, 4
        %s452 = scalar_lea.vmem %s8, %s451
        %p453 = scmp.lt.s32.totalorder %s28, 1
        %s454 = scalar_select %p453, %s28, 1
        %p455 = scmp.lt.s32.totalorder %s29, 0
        %s456 = scalar_select %p455, %s29, 0
        %s457 = sadd.s32 %s456, %s454
        %s458 = smul.addr %s457, 4
        %s459 = scalar_lea.vmem %s9, %s458
        %p460 = scmp.lt.s32.totalorder %s28, 1
        %s461 = scalar_select %p460, %s28, 1
        %p462 = scmp.lt.s32.totalorder %s29, 0
        %s463 = scalar_select %p462, %s29, 0
        %s464 = sadd.s32 %s463, %s461
        %s465 = smul.addr %s464, 8
        %s466 = scalar_lea.vmem %s10, %s465
        %v468 = vld [vmem:[%s445] sm:$0xff]
        %vm469 = vcmask 261120
        %v470 = vsel %vm469, %v468, 0.0
        %471 = vadd.xlane.f32.xlu0 %v470
        %v472 = vpop.xlane.xlu0 %471
        %v473 = vrcp.pop 32.0
        %v474 = vmul.f32 32.0, %v473
        %v475 = vsub.f32 1.0, %v474
        %v476 = vmul.f32 %v473, %v475
        %v477 = vadd.f32 %v473, %v476
        %vm478 = vweird.f32 %v473
        %v479 = vsel %vm478, %v473, %v477
        %v480 = vmul.f32 %v472, %v479
        %v481 = vsub.f32 %v468, %v480
        %v482 = vmul.f32 %v481, %v481
        %v483 = vsel %vm469, %v482, 0.0
        %484 = vadd.xlane.f32.xlu0 %v483
        %v485 = vpop.xlane.xlu0 %484
        %v486 = vmul.f32 %v485, %v479
        %v487 = vadd.f32 %v486, 1e-05
        %v488 = vrsqrt.pop %v487
        %v489 = vmul.f32 %v488, %v487
        %v490 = vmul.f32 %v489, %v488
        %v491 = vmul.f32 0.5, %v490
        %v492 = vsub.f32 1.5, %v491
        %v493 = vmul.f32 %v488, %v492
        %vm494 = vweird.f32 %v487
        %vm495 = vweird.f32 %v488
        %vm496 = vmor %vm494, %vm495
        %v497 = vsel %vm496, %v488, %v493
        %v498 = vmul.f32 %v481, %v497
        %v499 = vld [vmem:[%s1] sm:$0x1]
        %v501 = vperm.slane %v499, 0
        %v503 = vmul.f32 %v498, %v501
        %v504 = vld [vmem:[%s2] sm:$0x1]
        %v506 = vperm.slane %v504, 0
        %v508 = vadd.f32 %v503, %v506
        %v509 = vpack.c.bf16 %v508, %v508
        %v510 = vld [vmem:[%s3] sm:$0xf]
        %v511 = vld [vmem:[%s3 + $0x4] sm:$0xf]
        %v512 = vld [vmem:[%s3 + $0x8] sm:$0xf]
        %v513 = vld [vmem:[%s3 + $0xc] sm:$0xf]
        %v518 = vunpack.c.l.b16 %v510
        %v519 = vunpack.c.l.b16 %v511
        %v520 = vunpack.c.l.b16 %v512
        %v521 = vunpack.c.l.b16 %v513
        %v522 = vpack.c.b16 %v519, %v518
        %v523 = vpack.c.b16 %v521, %v520
        %v527 = vsel %vm469, %v509, 0
        %529 = vmatpush.bf16.msra.mxu0 0
        %530 = vmatpush.bf16.msra.mxu0 0
        %531 = vmatpush.bf16.msra.mxu0 0
        %532 = vmatpush.bf16.msra.mxu0 0
        %533 = vmatpush.bf16.msra.mxu0 0
        %534 = vmatpush.bf16.msra.mxu0 0
        %535 = vmatpush.bf16.msra.mxu0 %v523
        %536 = vmatpush.bf16.msra.mxu0 %v522
        %537 = vmatmul.bf16.gmra.mxu0 %v527
        %v538 = vpop.f32.mrf.mxu0
        %v539 = vadd.f32 0.0, %v538
        %v540 = vpop.f32.mrf.mxu0
        %541 = vdwg.mxu0
        %v542 = vld [vmem:[%s4] sm:$0xf]
        %v543 = vld [vmem:[%s4 + $0x4] sm:$0xf]
        %v544 = vld [vmem:[%s4 + $0x8] sm:$0xf]
        %v545 = vld [vmem:[%s4 + $0xc] sm:$0xf]
        %v550 = vunpack.c.l.b16 %v542
        %v551 = vunpack.c.l.b16 %v543
        %v552 = vunpack.c.l.b16 %v544
        %v553 = vunpack.c.l.b16 %v545
        %v554 = vpack.c.b16 %v551, %v550
        %v555 = vpack.c.b16 %v553, %v552
        %558 = vmatpush.bf16.msra.mxu0 0
        %559 = vmatpush.bf16.msra.mxu0 0
        %560 = vmatpush.bf16.msra.mxu0 0
        %561 = vmatpush.bf16.msra.mxu0 0
        %562 = vmatpush.bf16.msra.mxu0 0
        %563 = vmatpush.bf16.msra.mxu0 0
        %564 = vmatpush.bf16.msra.mxu0 %v555
        %565 = vmatpush.bf16.msra.mxu0 %v554
        %566 = vmatmul.bf16.gmra.mxu0 %v527
        %v567 = vpop.f32.mrf.mxu0
        %v568 = vadd.f32 0.0, %v567
        %v569 = vpop.f32.mrf.mxu0
        %570 = vdwg.mxu0
        %v571 = vld [vmem:[%s5] sm:$0xf]
        %v572 = vld [vmem:[%s5 + $0x4] sm:$0xf]
        %v573 = vld [vmem:[%s5 + $0x8] sm:$0xf]
        %v574 = vld [vmem:[%s5 + $0xc] sm:$0xf]
        %v579 = vunpack.c.l.b16 %v571
        %v580 = vunpack.c.l.b16 %v572
        %v581 = vunpack.c.l.b16 %v573
        %v582 = vunpack.c.l.b16 %v574
        %v583 = vpack.c.b16 %v580, %v579
        %v584 = vpack.c.b16 %v582, %v581
        %587 = vmatpush.bf16.msra.mxu0 0
        %588 = vmatpush.bf16.msra.mxu0 0
        %589 = vmatpush.bf16.msra.mxu0 0
        %590 = vmatpush.bf16.msra.mxu0 0
        %591 = vmatpush.bf16.msra.mxu0 0
        %592 = vmatpush.bf16.msra.mxu0 0
        %593 = vmatpush.bf16.msra.mxu0 %v584
        %594 = vmatpush.bf16.msra.mxu0 %v583
        %595 = vmatmul.bf16.gmra.mxu0 %v527
        %v596 = vpop.f32.mrf.mxu0
        %v597 = vadd.f32 0.0, %v596
        %v598 = vpop.f32.mrf.mxu0
        %599 = vdwg.mxu0
        %v600 = vld [vmem:[#allocation2] sm:$0xff]
        %v601 = vld [vmem:[#allocation4] sm:$0xff]
        %v602 = vmul.f32 %v568, %v600
        %v603 = vsub.f32 0.0, %v568
        %605 = vrot.lane.b32.xlu0 %v603, 124
        %v606 = vpop.permute.xlu0 %605
        %609 = vrot.lane.b32.xlu0 %v568, 4
        %v610 = vpop.permute.xlu0 %609
        %vm612 = vcmask 31744
        %v613 = vsel %vm612, %v606, %v610
        %v614 = vmul.f32 %v613, %v601
        %v615 = vadd.f32 %v602, %v614
        %vm616 = vcmask 257024
        %617 = vst.msk [vmem:[%s452] sm:$0xf] %vm616, %v509
        %v618 = vpack.c.bf16 %v539, %v539
        %619 = vst.msk [vmem:[%s459] sm:$0xf] %vm616, %v618
        %621 = vrot.lane.b32.xlu0 %v597, 8
        %v622 = vpop.permute.xlu0 %621
        %vm624 = vcmask 64512
        %v625 = vsel %vm624, %v615, %v622
        %vm626 = vcmask 130048
        %627 = vst.msk [vmem:[%s466] sm:$0xff] %vm626, %v625
        %p628 = scmp.lt.s32.totalorder %s28, 1
        %s629 = scalar_select %p628, %s28, 1
        %p630 = scmp.lt.s32.totalorder %s29, 0
        %s631 = scalar_select %p630, %s29, 0
        %s632 = sadd.s32 %s631, %s629
        %s633 = smul.addr %s632, 4
        %s634 = scalar_lea.vmem %s8, %s633
        %p635 = scmp.lt.s32.totalorder %s28, 1
        %s636 = scalar_select %p635, %s28, 1
        %p637 = scmp.lt.s32.totalorder %s29, 0
        %s638 = scalar_select %p637, %s29, 0
        %s639 = sadd.s32 %s638, %s636
        %s640 = smul.addr %s639, 4
        %s641 = scalar_lea.vmem %s9, %s640
        %p642 = scmp.lt.s32.totalorder %s28, 1
        %s643 = scalar_select %p642, %s28, 1
        %p644 = scmp.lt.s32.totalorder %s29, 0
        %s645 = scalar_select %p644, %s29, 0
        %s646 = sadd.s32 %s645, %s643
        %s647 = smul.addr %s646, 8
        %s648 = scalar_lea.vmem %s10, %s647
        // Predicated region
        $region61: #{decoder_layer.3} parent=51 // pred_check
          %p649 = pneg %p241
        $region62: #{decoder_layer.3} parent=51 // pred_check_branch
          %651 = sbr.rel (%p649) target = $region64
        $region63: #{decoder_layer.3} parent=51 // pred_region
          _
        $region64: #{decoder_layer.3} parent=51 // pred_fallthru
          _
        // Predicated region
        $region65: #{decoder_layer.3} parent=51 // pred_check
          %p652 = pneg %p269
        $region66: #{decoder_layer.3} parent=51 // pred_check_branch
          %654 = sbr.rel (%p652) target = $region68
        $region67: #{decoder_layer.3} parent=51 // pred_region
          _
        $region68: #{decoder_layer.3} parent=51 // pred_fallthru
          _
        // Predicated region
        $region69: #{decoder_layer.3} parent=51 // pred_check
          %p655 = pneg %p297
        $region70: #{decoder_layer.3} parent=51 // pred_check_branch
          %657 = sbr.rel (%p655) target = $region72
        $region71: #{decoder_layer.3} parent=51 // pred_region
          _
        $region72: #{decoder_layer.3} parent=51 // pred_fallthru
          _
      $region52: #{decoder_layer.3} parent=5 // pred_fallthru
        _
      %p658 = scmp.le.s32.totalorder 2, %s19
      // Predicated region
      $region73: #{decoder_layer.3} parent=5 // pred_check
        %p659 = pneg %p658
      $region74: #{decoder_layer.3} parent=5 // pred_check_branch
        %661 = sbr.rel (%p659) target = $region76
      $region75: #{decoder_layer.3} parent=5 // pred_region
        %s662 = ssub.s32 %s19, 2
        // Predicated region
        $region77: #{decoder_layer.3} parent=75 // pred_check
          %p663 = pneg %p247
        $region78: #{decoder_layer.3} parent=75 // pred_check_branch
          %665 = sbr.rel (%p663) target = $region80
        $region79: #{decoder_layer.3} parent=75 // pred_region
          %p666 = scmp.lt.s32.totalorder %s30, 1
          %s667 = scalar_select %p666, %s30, 1
          %p668 = scmp.lt.s32.totalorder %s31, 0
          %s669 = scalar_select %p668, %s31, 0
          %s670 = sadd.s32 %s669, %s667
          %s671 = smul.addr %s670, 4
          %s672 = scalar_lea.vmem %s8, %s671
        $region80: #{decoder_layer.3} parent=75 // pred_fallthru
          _
        // Predicated region
        $region81: #{decoder_layer.3} parent=75 // pred_check
          %p673 = pneg %p275
        $region82: #{decoder_layer.3} parent=75 // pred_check_branch
          %675 = sbr.rel (%p673) target = $region84
        $region83: #{decoder_layer.3} parent=75 // pred_region
          %p676 = scmp.lt.s32.totalorder %s30, 1
          %s677 = scalar_select %p676, %s30, 1
          %p678 = scmp.lt.s32.totalorder %s31, 0
          %s679 = scalar_select %p678, %s31, 0
          %s680 = sadd.s32 %s679, %s677
          %s681 = smul.addr %s680, 4
          %s682 = scalar_lea.vmem %s9, %s681
        $region84: #{decoder_layer.3} parent=75 // pred_fallthru
          _
        // Predicated region
        $region85: #{decoder_layer.3} parent=75 // pred_check
          %p683 = pneg %p303
        $region86: #{decoder_layer.3} parent=75 // pred_check_branch
          %685 = sbr.rel (%p683) target = $region88
        $region87: #{decoder_layer.3} parent=75 // pred_region
          %p686 = scmp.lt.s32.totalorder %s30, 1
          %s687 = scalar_select %p686, %s30, 1
          %p688 = scmp.lt.s32.totalorder %s31, 0
          %s689 = scalar_select %p688, %s31, 0
          %s690 = sadd.s32 %s689, %s687
          %s691 = smul.addr %s690, 8
          %s692 = scalar_lea.vmem %s10, %s691
        $region88: #{decoder_layer.3} parent=75 // pred_fallthru
          _
      $region76: #{decoder_layer.3} parent=5 // pred_fallthru
        _
    $region6: #{decoder_layer.3} parent=1 // loop_footer
      %s23 = sadd.s32 1, %s19
    $region7: #{decoder_layer.3} parent=1 // loop_footer_branch
      %18 = sbr.rel target = $region3
    $region8: #{decoder_layer.3} parent=1 // loop_exit
      _
    %693 = vsyncpa [#allocation3], 1
    %s694 = scalar_lea.sflag [#allocation3], 1
    %695 = vsyncpa %s694, 1
    %696 = vsyncpa [#allocation5], 1

// kernel: decoder_layer.5
$region0: #{decoder_layer.5}
  #allocation0 [shape = 'u32[]', space=smem, size = 0x4, offset = 0x4, fixed_abs, tag = 'smem constant byte address 0x4 - core index']
  #allocation1 [shape = 'u32[72,128]{1,0:T(1,128)}', space=vmem, size = 0x9000, scoped, tag = 'internal scratch']
  #allocation2 [shape = 'f32[8,32]{1,0:T(8,128)}', space=vmem, size = 0x1000, scoped, tag = 'scratch operand']
  %s0 = inlined_call_operand.vmem [shape: bf16[2,8,32], index: 0, kind: input, shape index: {}]
  %s1 = inlined_call_operand.vmem [shape: bf16[2,8,32], index: 1, kind: input, shape index: {}]
  %s2 = inlined_call_operand.vmem [shape: f32[2,8,32], index: 2, kind: input, shape index: {}]
  %s3 = inlined_call_operand.vmem [shape: bf16[32,32], index: 3, kind: input, shape index: {}]
  %s4 = inlined_call_operand.vmem [shape: bf16[32,128], index: 4, kind: input, shape index: {}]
  %s5 = inlined_call_operand.vmem [shape: bf16[128,32], index: 5, kind: input, shape index: {}]
  %s6 = inlined_call_operand.hbm [shape: f32[2,8,32], index: 6, kind: output, shape index: {}]
  %s7 = sld [smem:[#allocation0]]
  $region65: #{decoder_layer.5} parent=0
    _
  %s9 = ssub.s32 1, %s7
  %s10 = scalar_select 0, %s9, %s7
  $region1: #{decoder_layer.5} parent=0
    #allocation3 [shape = 'u8[8192]{0}', space=vmem, size = 0x2000, scoped, tag = 'output window, operand 0']
    #allocation4 [shape = 's32[2]{0}', space=sflag, size = 0x8, scoped, tag = 'scoped memory for decoder_layer.5']
    %11 = vsyncpa [#allocation4], 0
    %s12 = scalar_lea.sflag [#allocation4], 1
    %13 = vsyncpa %s12, 0
    loop: start=0, step=1, limit=4
    $region2: #{decoder_layer.5} parent=1 // loop_pre_header
      _
    $region3: #{decoder_layer.5} parent=1 // loop_header
      %s15 = sphi 0, %s19
      %p16 = scmp.ge.s32.totalorder %s15, 4
      %s22 = sphi 0, %s41
      %s23 = sphi 0, %s37
      %s24 = sphi 0, %s33
      %s25 = sphi 0, %s22
      %s26 = sphi 0, %s23
      %s27 = sphi 0, %s24
      %s28 = sphi 0, %s25
      %s29 = sphi 0, %s26
      %s30 = sphi 0, %s27
      %s46 = sphi 0, %s48
      %s49 = sphi 0, %s46
      %s50 = sphi 0, %s49
      %s66 = sphi 0, %s50
      %s74 = sphi 0, %s76
      %s77 = sphi 0, %s74
      %s78 = sphi 0, %s77
      %s94 = sphi 0, %s78
      %s102 = sphi 0, %s104
      %s105 = sphi 0, %s102
      %s106 = sphi 0, %s105
      %s122 = sphi 0, %s106
      %s126 = sphi 0, %s126
      %s128 = sphi 0, %s126
      %s129 = sphi 0, %s128
      %s143 = sphi 0, %s129
      %s149 = sphi 0, %s151
      %s152 = sphi 0, %s149
      %s153 = sphi 0, %s152
      %s169 = sphi 0, %s153
      %s175 = sphi 0, %s177
      %s178 = sphi 0, %s175
      %s179 = sphi 0, %s178
      %s195 = sphi 0, %s179
      %s203 = sphi 0, %s205
      %s206 = sphi 0, %s203
      %s207 = sphi 0, %s206
      %s223 = sphi 0, %s207
    $region4: #{decoder_layer.5} parent=1 // loop_header_branch
      %18 = sbr.rel (%p16) target = $region8
    $region5: #{decoder_layer.5} parent=1 // loop_body
      %s20 = ssub.s32 %s15, 1
      %s21 = ssub.s32 %s15, 2
      %s31 = sadd.s32 1, %s24
      %p32 = scmp.ge.s32.totalorder %s31, 1
      %s33 = scalar_select %p32, 0, %s31
      %s34 = sadd.s32 1, %s23
      %s35 = scalar_select %p32, %s34, %s23
      %p36 = scmp.ge.s32.totalorder %s35, 1
      %s37 = scalar_select %p36, 0, %s35
      %s38 = sadd.s32 1, %s22
      %s39 = scalar_select %p36, %s38, %s22
      %p40 = scmp.ge.s32.totalorder %s39, 2
      %s41 = scalar_select %p40, 0, %s39
      %s42 = ssub.s32 %s22, %s41
      %s43 = ssub.s32 %s23, %s37
      %s44 = sor.u32 %s42, %s43
      %p45 = scmp.eq.s32.totalorder %s44, 0
      %s47 = sadd.s32 %s46, 1
      %s48 = scalar_select %p45, %s46, %s47
      %p51 = pneg %p45
      %p52 = scmp.eq.s32.totalorder %s15, 1
      %p53 = por %p51, %p52
      %p54 = scmp.ne.s32.totalorder %s46, %s49
      %p55 = scmp.eq.s32.totalorder %s15, 0
      %p56 = por %p54, %p55
      %p57 = scmp.ne.s32.totalorder %s46, %s49
      %p58 = scmp.eq.s32.totalorder %s20, 1
      %p59 = por %p57, %p58
      %p60 = scmp.ne.s32.totalorder %s49, %s50
      %p61 = scmp.eq.s32.totalorder %s20, 0
      %p62 = por %p60, %p61
      %p63 = scmp.ne.s32.totalorder %s49, %s50
      %p64 = scmp.eq.s32.totalorder %s21, 1
      %p65 = por %p63, %p64
      %p67 = scmp.ne.s32.totalorder %s50, %s66
      %p68 = scmp.eq.s32.totalorder %s21, 0
      %p69 = por %p67, %p68
      %s70 = ssub.s32 %s22, %s41
      %s71 = ssub.s32 %s23, %s37
      %s72 = sor.u32 %s70, %s71
      %p73 = scmp.eq.s32.totalorder %s72, 0
      %s75 = sadd.s32 %s74, 1
      %s76 = scalar_select %p73, %s74, %s75
      %p79 = pneg %p73
      %p80 = scmp.eq.s32.totalorder %s15, 1
      %p81 = por %p79, %p80
      %p82 = scmp.ne.s32.totalorder %s74, %s77
      %p83 = scmp.eq.s32.totalorder %s15, 0
      %p84 = por %p82, %p83
      %p85 = scmp.ne.s32.totalorder %s74, %s77
      %p86 = scmp.eq.s32.totalorder %s20, 1
      %p87 = por %p85, %p86
      %p88 = scmp.ne.s32.totalorder %s77, %s78
      %p89 = scmp.eq.s32.totalorder %s20, 0
      %p90 = por %p88, %p89
      %p91 = scmp.ne.s32.totalorder %s77, %s78
      %p92 = scmp.eq.s32.totalorder %s21, 1
      %p93 = por %p91, %p92
      %p95 = scmp.ne.s32.totalorder %s78, %s94
      %p96 = scmp.eq.s32.totalorder %s21, 0
      %p97 = por %p95, %p96
      %s98 = ssub.s32 %s22, %s41
      %s99 = ssub.s32 %s23, %s37
      %s100 = sor.u32 %s98, %s99
      %p101 = scmp.eq.s32.totalorder %s100, 0
      %s103 = sadd.s32 %s102, 1
      %s104 = scalar_select %p101, %s102, %s103
      %p107 = pneg %p101
      %p108 = scmp.eq.s32.totalorder %s15, 1
      %p109 = por %p107, %p108
      %p110 = scmp.ne.s32.totalorder %s102, %s105
      %p111 = scmp.eq.s32.totalorder %s15, 0
      %p112 = por %p110, %p111
      %p113 = scmp.ne.s32.totalorder %s102, %s105
      %p114 = scmp.eq.s32.totalorder %s20, 1
      %p115 = por %p113, %p114
      %p116 = scmp.ne.s32.totalorder %s105, %s106
      %p117 = scmp.eq.s32.totalorder %s20, 0
      %p118 = por %p116, %p117
      %p119 = scmp.ne.s32.totalorder %s105, %s106
      %p120 = scmp.eq.s32.totalorder %s21, 1
      %p121 = por %p119, %p120
      %p123 = scmp.ne.s32.totalorder %s106, %s122
      %p124 = scmp.eq.s32.totalorder %s21, 0
      %p125 = por %p123, %p124
      %s127 = sadd.s32 %s126, 1
      %p130 = scmp.eq.s32.totalorder %s15, 1
      %p131 = scmp.ne.s32.totalorder %s126, %s128
      %p132 = scmp.eq.s32.totalorder %s15, 0
      %p133 = por %p131, %p132
      %p134 = scmp.ne.s32.totalorder %s126, %s128
      %p135 = scmp.eq.s32.totalorder %s20, 1
      %p136 = por %p134, %p135
      %p137 = scmp.ne.s32.totalorder %s128, %s129
      %p138 = scmp.eq.s32.totalorder %s20, 0
      %p139 = por %p137, %p138
      %p140 = scmp.ne.s32.totalorder %s128, %s129
      %p141 = scmp.eq.s32.totalorder %s21, 1
      %p142 = por %p140, %p141
      %p144 = scmp.ne.s32.totalorder %s129, %s143
      %p145 = scmp.eq.s32.totalorder %s21, 0
      %p146 = por %p144, %p145
      %s147 = ssub.s32 %s24, %s33
      %p148 = scmp.eq.s32.totalorder %s147, 0
      %s150 = sadd.s32 %s149, 1
      %s151 = scalar_select %p148, %s149, %s150
      %p154 = pneg %p148
      %p155 = scmp.eq.s32.totalorder %s15, 1
      %p156 = por %p154, %p155
      %p157 = scmp.ne.s32.totalorder %s149, %s152
      %p158 = scmp.eq.s32.totalorder %s15, 0
      %p159 = por %p157, %p158
      %p160 = scmp.ne.s32.totalorder %s149, %s152
      %p161 = scmp.eq.s32.totalorder %s20, 1
      %p162 = por %p160, %p161
      %p163 = scmp.ne.s32.totalorder %s152, %s153
      %p164 = scmp.eq.s32.totalorder %s20, 0
      %p165 = por %p163, %p164
      %p166 = scmp.ne.s32.totalorder %s152, %s153
      %p167 = scmp.eq.s32.totalorder %s21, 1
      %p168 = por %p166, %p167
      %p170 = scmp.ne.s32.totalorder %s153, %s169
      %p171 = scmp.eq.s32.totalorder %s21, 0
      %p172 = por %p170, %p171
      %s173 = ssub.s32 %s24, %s33
      %p174 = scmp.eq.s32.totalorder %s173, 0
      %s176 = sadd.s32 %s175, 1
      %s177 = scalar_select %p174, %s175, %s176
      %p180 = pneg %p174
      %p181 = scmp.eq.s32.totalorder %s15, 1
      %p182 = por %p180, %p181
      %p183 = scmp.ne.s32.totalorder %s175, %s178
      %p184 = scmp.eq.s32.totalorder %s15, 0
      %p185 = por %p183, %p184
      %p186 = scmp.ne.s32.totalorder %s175, %s178
      %p187 = scmp.eq.s32.totalorder %s20, 1
      %p188 = por %p186, %p187
      %p189 = scmp.ne.s32.totalorder %s178, %s179
      %p190 = scmp.eq.s32.totalorder %s20, 0
      %p191 = por %p189, %p190
      %p192 = scmp.ne.s32.totalorder %s178, %s179
      %p193 = scmp.eq.s32.totalorder %s21, 1
      %p194 = por %p192, %p193
      %p196 = scmp.ne.s32.totalorder %s179, %s195
      %p197 = scmp.eq.s32.totalorder %s21, 0
      %p198 = por %p196, %p197
      %s199 = ssub.s32 %s22, %s41
      %s200 = ssub.s32 %s23, %s37
      %s201 = sor.u32 %s199, %s200
      %p202 = scmp.eq.s32.totalorder %s201, 0
      %s204 = sadd.s32 %s203, 1
      %s205 = scalar_select %p202, %s203, %s204
      %p208 = pneg %p202
      %p209 = scmp.eq.s32.totalorder %s15, 1
      %p210 = por %p208, %p209
      %p211 = scmp.ne.s32.totalorder %s203, %s206
      %p212 = scmp.eq.s32.totalorder %s15, 0
      %p213 = por %p211, %p212
      %p214 = scmp.ne.s32.totalorder %s203, %s206
      %p215 = scmp.eq.s32.totalorder %s20, 1
      %p216 = por %p214, %p215
      %p217 = scmp.ne.s32.totalorder %s206, %s207
      %p218 = scmp.eq.s32.totalorder %s20, 0
      %p219 = por %p217, %p218
      %p220 = scmp.ne.s32.totalorder %s206, %s207
      %p221 = scmp.eq.s32.totalorder %s21, 1
      %p222 = por %p220, %p221
      %p224 = scmp.ne.s32.totalorder %s207, %s223
      %p225 = scmp.eq.s32.totalorder %s21, 0
      %p226 = por %p224, %p225
      %p227 = scmp.le.s32.totalorder 1, %s15
      %p228 = scmp.lt.s32.totalorder %s15, 3
      %p229 = pnand %p227, %p228
      %p230 = pneg %p229
      // Predicated region
      $region9: #{decoder_layer.5} parent=5 // pred_check
        _
      $region10: #{decoder_layer.5} parent=5 // pred_check_branch
        %232 = sbr.rel (%p229) target = $region12
      $region11: #{decoder_layer.5} parent=5 // pred_region
        %s233 = ssub.s32 %s15, 1
        // Predicated region
        $region13: #{decoder_layer.5} parent=11 // pred_check
          %p234 = pneg %p139
        $region14: #{decoder_layer.5} parent=11 // pred_check_branch
          %236 = sbr.rel (%p234) target = $region16
        $region15: #{decoder_layer.5} parent=11 // pred_region
          _
        $region16: #{decoder_layer.5} parent=11 // pred_fallthru
          _
        // Predicated region
        $region17: #{decoder_layer.5} parent=11 // pred_check
          %p237 = pneg %p165
        $region18: #{decoder_layer.5} parent=11 // pred_check_branch
          %239 = sbr.rel (%p237) target = $region20
        $region19: #{decoder_layer.5} parent=11 // pred_region
          %p240 = scmp.lt.s32.totalorder %s27, 0
          %s241 = scalar_select %p240, %s27, 0
          %s242 = smul.addr %s241, 4
          %s243 = scalar_lea.vmem %s4, %s242
        $region20: #{decoder_layer.5} parent=11 // pred_fallthru
          _
        // Predicated region
        $region21: #{decoder_layer.5} parent=11 // pred_check
          %p244 = pneg %p191
        $region22: #{decoder_layer.5} parent=11 // pred_check_branch
          %246 = sbr.rel (%p244) target = $region24
        $region23: #{decoder_layer.5} parent=11 // pred_region
          %s247 = smul.u32 16, %s27
          %p248 = scmp.lt.s32.totalorder %s247, 15
          %s249 = scalar_select %p248, %s247, 15
          %s250 = smul.addr %s249, 4
          %s251 = scalar_lea.vmem %s5, %s250
          %s252 = smul.u32 16, %s27
        $region24: #{decoder_layer.5} parent=11 // pred_fallthru
          _
      $region12: #{decoder_layer.5} parent=5 // pred_fallthru
        _
      %p253 = scmp.lt.s32.totalorder %s15, 2
      // Predicated region
      $region25: #{decoder_layer.5} parent=5 // pred_check
        %p254 = pneg %p253
      $region26: #{decoder_layer.5} parent=5 // pred_check_branch
        %256 = sbr.rel (%p254) target = $region28
      $region27: #{decoder_layer.5} parent=5 // pred_region
        // Predicated region
        $region29: #{decoder_layer.5} parent=27 // pred_check
          %p257 = pneg %p56
        $region30: #{decoder_layer.5} parent=27 // pred_check_branch
          %259 = sbr.rel (%p257) target = $region32
        $region31: #{decoder_layer.5} parent=27 // pred_region
          %p260 = scmp.lt.s32.totalorder %s22, 1
          %s261 = scalar_select %p260, %s22, 1
          %p262 = scmp.lt.s32.totalorder %s23, 0
          %s263 = scalar_select %p262, %s23, 0
          %s264 = sadd.s32 %s263, %s261
          %s265 = smul.addr %s264, 4
          %s266 = scalar_lea.vmem %s0, %s265
        $region32: #{decoder_layer.5} parent=27 // pred_fallthru
          _
        // Predicated region
        $region33: #{decoder_layer.5} parent=27 // pred_check
          %p267 = pneg %p84
        $region34: #{decoder_layer.5} parent=27 // pred_check_branch
          %269 = sbr.rel (%p267) target = $region36
        $region35: #{decoder_layer.5} parent=27 // pred_region
          %p270 = scmp.lt.s32.totalorder %s22, 1
          %s271 = scalar_select %p270, %s22, 1
          %p272 = scmp.lt.s32.totalorder %s23, 0
          %s273 = scalar_select %p272, %s23, 0
          %s274 = sadd.s32 %s273, %s271
          %s275 = smul.addr %s274, 4
          %s276 = scalar_lea.vmem %s1, %s275
        $region36: #{decoder_layer.5} parent=27 // pred_fallthru
          _
        // Predicated region
        $region37: #{decoder_layer.5} parent=27 // pred_check
          %p277 = pneg %p112
        $region38: #{decoder_layer.5} parent=27 // pred_check_branch
          %279 = sbr.rel (%p277) target = $region40
        $region39: #{decoder_layer.5} parent=27 // pred_region
          %p280 = scmp.lt.s32.totalorder %s22, 1
          %s281 = scalar_select %p280, %s22, 1
          %p282 = scmp.lt.s32.totalorder %s23, 0
          %s283 = scalar_select %p282, %s23, 0
          %s284 = sadd.s32 %s283, %s281
          %s285 = smul.addr %s284, 8
          %s286 = scalar_lea.vmem %s2, %s285
        $region40: #{decoder_layer.5} parent=27 // pred_fallthru
          _
      $region28: #{decoder_layer.5} parent=5 // pred_fallthru
        _
      %p287 = scmp.le.s32.totalorder 1, %s15
      %p288 = scmp.lt.s32.totalorder %s15, 3
      %p289 = pnand %p287, %p288
      %p290 = pneg %p289
      // Predicated region
      $region41: #{decoder_layer.5} parent=5 // pred_check
        _
      $region42: #{decoder_layer.5} parent=5 // pred_check_branch
        %292 = sbr.rel (%p289) target = $region44
      $region43: #{decoder_layer.5} parent=5 // pred_region
        %s293 = ssub.s32 %s15, 1
        %p294 = scmp.lt.s32.totalorder %s25, 1
        %s295 = scalar_select %p294, %s25, 1
        %p296 = scmp.lt.s32.totalorder %s26, 0
        %s297 = scalar_select %p296, %s26, 0
        %s298 = sadd.s32 %s297, %s295
        %s299 = smul.addr %s298, 4
        %s300 = scalar_lea.vmem %s0, %s299
        %p301 = pneg %p62
        %p302 = pneg %p59
        %p303 = scmp.lt.s32.totalorder %s25, 1
        %s304 = scalar_select %p303, %s25, 1
        %p305 = scmp.lt.s32.totalorder %s26, 0
        %s306 = scalar_select %p305, %s26, 0
        %s307 = sadd.s32 %s306, %s304
        %s308 = smul.addr %s307, 4
        %s309 = scalar_lea.vmem %s1, %s308
        %p310 = pneg %p90
        %p311 = pneg %p87
        %p312 = scmp.lt.s32.totalorder %s25, 1
        %s313 = scalar_select %p312, %s25, 1
        %p314 = scmp.lt.s32.totalorder %s26, 0
        %s315 = scalar_select %p314, %s26, 0
        %s316 = sadd.s32 %s315, %s313
        %s317 = smul.addr %s316, 8
        %s318 = scalar_lea.vmem %s2, %s317
        %p319 = pneg %p118
        %p320 = pneg %p115
        %p321 = pneg %p139
        %p322 = pneg %p136
        %p323 = scmp.lt.s32.totalorder %s27, 0
        %s324 = scalar_select %p323, %s27, 0
        %s325 = smul.addr %s324, 4
        %s326 = scalar_lea.vmem %s4, %s325
        %p327 = pneg %p165
        %p328 = pneg %p162
        %s329 = smul.u32 16, %s27
        %p330 = scmp.lt.s32.totalorder %s329, 15
        %s331 = scalar_select %p330, %s329, 15
        %s332 = smul.addr %s331, 4
        %s333 = scalar_lea.vmem %s5, %s332
        %p334 = pneg %p191
        %p335 = pneg %p188
        %p336 = pneg %p219
        %p337 = pneg %p216
        %s338 = sand.u32 %s206, 1
        %s339 = scalar_lea.sflag [#allocation4], %s338
        %s340 = sand.u32 %s206, 1
        %s341 = smul.addr %s340, 8
        %s342 = scalar_lea.vmem [#allocation3], %s341
        %p343 = scmp.lt.s32.totalorder %s25, 1
        %s344 = scalar_select %p343, %s25, 1
        %p345 = scmp.lt.s32.totalorder %s26, 0
        %s346 = scalar_select %p345, %s26, 0
        %s347 = sadd.s32 %s346, %s344
        %s348 = smul.addr %s347, 4
        %s349 = scalar_lea.vmem %s0, %s348
        %p350 = scmp.lt.s32.totalorder %s25, 1
        %s351 = scalar_select %p350, %s25, 1
        %p352 = scmp.lt.s32.totalorder %s26, 0
        %s353 = scalar_select %p352, %s26, 0
        %s354 = sadd.s32 %s353, %s351
        %s355 = smul.addr %s354, 4
        %s356 = scalar_lea.vmem %s1, %s355
        %p357 = scmp.lt.s32.totalorder %s25, 1
        %s358 = scalar_select %p357, %s25, 1
        %p359 = scmp.lt.s32.totalorder %s26, 0
        %s360 = scalar_select %p359, %s26, 0
        %s361 = sadd.s32 %s360, %s358
        %s362 = smul.addr %s361, 8
        %s363 = scalar_lea.vmem %s2, %s362
        %p364 = scmp.lt.s32.totalorder %s27, 0
        %s365 = scalar_select %p364, %s27, 0
        %s366 = smul.addr %s365, 4
        %s367 = scalar_lea.vmem %s4, %s366
        %s368 = smul.u32 16, %s27
        %p369 = scmp.lt.s32.totalorder %s368, 15
        %s370 = scalar_select %p369, %s368, 15
        %s371 = smul.addr %s370, 4
        %s372 = scalar_lea.vmem %s5, %s371
        %s373 = smul.u32 16, %s27
        %p375 = scmp.eq.s32.totalorder %s27, 0
        // Predicated region
        $region45: #{decoder_layer.5} parent=43 // pred_check
          %p376 = pneg %p375
        $region46: #{decoder_layer.5} parent=43 // pred_check_branch
          %378 = sbr.rel (%p376) target = $region48
        $region47: #{decoder_layer.5} parent=43 // pred_region
          %v379 = vld [vmem:[%s356] sm:$0xf]
          %v380 = vld [vmem:[%s3] sm:$0xf]
          %v381 = vld [vmem:[%s3 + $0x4] sm:$0xf]
          %v382 = vld [vmem:[%s3 + $0x8] sm:$0xf]
          %v383 = vld [vmem:[%s3 + $0xc] sm:$0xf]
          %v388 = vunpack.c.l.b16 %v380
          %v389 = vunpack.c.l.b16 %v381
          %v390 = vunpack.c.l.b16 %v382
          %v391 = vunpack.c.l.b16 %v383
          %v392 = vpack.c.b16 %v389, %v388
          %v393 = vpack.c.b16 %v391, %v390
          %vm396 = vcmask 261120
          %v398 = vsel %vm396, %v379, 0
          %400 = vmatpush.bf16.msra.mxu0 0
          %401 = vmatpush.bf16.msra.mxu0 0
          %402 = vmatpush.bf16.msra.mxu0 0
          %403 = vmatpush.bf16.msra.mxu0 0
          %404 = vmatpush.bf16.msra.mxu0 0
          %405 = vmatpush.bf16.msra.mxu0 0
          %406 = vmatpush.bf16.msra.mxu0 %v393
          %407 = vmatpush.bf16.msra.mxu0 %v392
          %408 = vmatmul.bf16.gmra.mxu0 %v398
          %v409 = vpop.f32.mrf.mxu0
          %v410 = vadd.f32 0.0, %v409
          %v411 = vpop.f32.mrf.mxu0
          %412 = vdwg.mxu0
          %v413 = vld [vmem:[%s363] sm:$0xff]
          %v414 = vadd.f32 %v413, %v410
          %415 = vst.msk [vmem:[#allocation2] sm:$0xff] %vm396, %v414
        $region48: #{decoder_layer.5} parent=43 // pred_fallthru
          _
        %v416 = vld [vmem:[%s349] sm:$0xf]
        %v417 = vld [vmem:[%s367] sm:$0xf]
        %v418 = vld [vmem:[%s367 + $0x4] sm:$0xf]
        %v419 = vld [vmem:[%s367 + $0x8] sm:$0xf]
        %v420 = vld [vmem:[%s367 + $0xc] sm:$0xf]
        %v425 = vunpack.c.l.b16 %v417
        %v426 = vunpack.c.l.b16 %v418
        %v427 = vunpack.c.l.b16 %v419
        %v428 = vunpack.c.l.b16 %v420
        %v429 = vpack.c.b16 %v426, %v425
        %v430 = vpack.c.b16 %v428, %v427
        %vm433 = vcmask 261120
        %v435 = vsel %vm433, %v416, 0
        %437 = vmatpush.bf16.msra.mxu0 0
        %438 = vmatpush.bf16.msra.mxu0 0
        %439 = vmatpush.bf16.msra.mxu0 0
        %440 = vmatpush.bf16.msra.mxu0 0
        %441 = vmatpush.bf16.msra.mxu0 0
        %442 = vmatpush.bf16.msra.mxu0 0
        %443 = vmatpush.bf16.msra.mxu0 %v430
        %444 = vmatpush.bf16.msra.mxu0 %v429
        %445 = vmatmul.bf16.gmra.mxu0 %v435
        %v446 = vpop.f32.mrf.mxu0
        %v447 = vadd.f32 0.0, %v446
        %v448 = vpop.f32.mrf.mxu0
        %449 = vdwg.mxu0
        %v450 = vmul.f32 %v447, 0.5
        %v451 = vmul.f32 %v447, 0.70710677
        %v452 = vmul.f32 %v451, %v451
        %v453 = vmin.f32 16.0, %v452
        %v454 = vmul.f32 %v453, 2.1237322e-06
        %v455 = vadd.f32 %v454, 0.00028619796
        %v456 = vmul.f32 %v453, %v455
        %v457 = vadd.f32 %v456, 0.0036580483
        %v458 = vmul.f32 %v453, %v457
        %v459 = vadd.f32 %v458, 0.05243302
        %v460 = vmul.f32 %v453, %v459
        %v461 = vadd.f32 %v460, 0.18741608
        %v462 = vmul.f32 %v453, %v461
        %v463 = vadd.f32 %v462, 1.1283791
        %v464 = vmul.f32 %v451, %v463
        %v465 = vmul.f32 %v453, 3.8918573e-05
        %v466 = vadd.f32 %v465, 0.001143296
        %v467 = vmul.f32 %v453, %v466
        %v468 = vadd.f32 %v467, 0.014752088
        %v469 = vmul.f32 %v453, %v468
        %v470 = vadd.f32 %v469, 0.112945676
        %v471 = vmul.f32 %v453, %v470
        %v472 = vadd.f32 %v471, 0.4994258
        %v473 = vmul.f32 %v453, %v472
        %v474 = vadd.f32 %v473, 1.0
        %v475 = vrcp.pop %v474
        %v476 = vmul.f32 %v474, %v475
        %v477 = vsub.f32 1.0, %v476
        %v478 = vmul.f32 %v475, %v477
        %v479 = vadd.f32 %v475, %v478
        %vm480 = vweird.f32 %v474
        %vm481 = vweird.f32 %v475
        %vm482 = vmor %vm480, %vm481
        %v483 = vsel %vm482, %v475, %v479
        %v484 = vand.u32 2147483647, %v474
        %vm485 = vcmp.eq.f32.partialorder %v484, 8.507059e+37
        %v486 = vand.u32 %v474, 2147483648
        %v487 = vor.u32 1.1754944e-38, %v486
        %v488 = vsel %vm485, %v487, %v483
        %v489 = vmul.f32 %v464, %v488
        %v490 = vmin.f32 %v489, 1.0
        %v491 = vmax.f32 %v490, -1.0
        %v492 = vadd.f32 %v491, 1.0
        %v493 = vmul.f32 %v450, %v492
        %v494 = vld [vmem:[#allocation2] sm:$0xff]
        %v495 = vpack.c.bf16 %v493, %v493
        %v496 = vld [vmem:[%s372] sm:$0xf]
        %v497 = vld [vmem:[%s372 + $0x4] sm:$0xf]
        %v498 = vld [vmem:[%s372 + $0x8] sm:$0xf]
        %v499 = vld [vmem:[%s372 + $0xc] sm:$0xf]
        %v500 = vld [vmem:[%s372 + $0x10] sm:$0xf]
        %v501 = vld [vmem:[%s372 + $0x14] sm:$0xf]
        %v502 = vld [vmem:[%s372 + $0x18] sm:$0xf]
        %v503 = vld [vmem:[%s372 + $0x1c] sm:$0xf]
        %v504 = vld [vmem:[%s372 + $0x20] sm:$0xf]
        %v505 = vld [vmem:[%s372 + $0x24] sm:$0xf]
        %v506 = vld [vmem:[%s372 + $0x28] sm:$0xf]
        %v507 = vld [vmem:[%s372 + $0x2c] sm:$0xf]
        %v508 = vld [vmem:[%s372 + $0x30] sm:$0xf]
        %v509 = vld [vmem:[%s372 + $0x34] sm:$0xf]
        %v510 = vld [vmem:[%s372 + $0x38] sm:$0xf]
        %v511 = vld [vmem:[%s372 + $0x3c] sm:$0xf]
        %v528 = vunpack.c.l.b16 %v496
        %v529 = vunpack.c.l.b16 %v497
        %v530 = vunpack.c.l.b16 %v498
        %v531 = vunpack.c.l.b16 %v499
        %v532 = vunpack.c.l.b16 %v500
        %v533 = vunpack.c.l.b16 %v501
        %v534 = vunpack.c.l.b16 %v502
        %v535 = vunpack.c.l.b16 %v503
        %v536 = vunpack.c.l.b16 %v504
        %v537 = vunpack.c.l.b16 %v505
        %v538 = vunpack.c.l.b16 %v506
        %v539 = vunpack.c.l.b16 %v507
        %v540 = vunpack.c.l.b16 %v508
        %v541 = vunpack.c.l.b16 %v509
        %v542 = vunpack.c.l.b16 %v510
        %v543 = vunpack.c.l.b16 %v511
        %v544 = vpack.c.b16 %v529, %v528
        %v545 = vpack.c.b16 %v531, %v530
        %v546 = vpack.c.b16 %v533, %v532
        %v547 = vpack.c.b16 %v535, %v534
        %v548 = vpack.c.b16 %v537, %v536
        %v549 = vpack.c.b16 %v539, %v538
        %v550 = vpack.c.b16 %v541, %v540
        %v551 = vpack.c.b16 %v543, %v542
        %560 = vmatpush.bf16.msra.mxu0 %v551
        %561 = vmatpush.bf16.msra.mxu0 %v550
        %562 = vmatpush.bf16.msra.mxu0 %v549
        %563 = vmatpush.bf16.msra.mxu0 %v548
        %564 = vmatpush.bf16.msra.mxu0 %v547
        %565 = vmatpush.bf16.msra.mxu0 %v546
        %566 = vmatpush.bf16.msra.mxu0 %v545
        %567 = vmatpush.bf16.msra.mxu0 %v544
        %568 = vmatmul.bf16.gmra.mxu0 %v495
        %v569 = vpop.f32.mrf.mxu0
        %v570 = vadd.f32 0.0, %v569
        %v571 = vpop.f32.mrf.mxu0
        %572 = vdwg.mxu0
        %v573 = vadd.f32 %v494, %v570
        %574 = vst.msk [vmem:[#allocation2] sm:$0xff] %vm433, %v573
        // Predicated region
        $region49: #{decoder_layer.5} parent=43 // pred_check
          %p575 = pneg %p375
        $region50: #{decoder_layer.5} parent=43 // pred_check_branch
          %577 = sbr.rel (%p575) target = $region52
        $region51: #{decoder_layer.5} parent=43 // pred_region
          %v578 = vld [vmem:[#allocation2] sm:$0xff]
          %579 = vst.msk [vmem:[%s342] sm:$0xff] %vm433, %v578
        $region52: #{decoder_layer.5} parent=43 // pred_fallthru
          _
        %s580 = sand.u32 %s206, 1
        %s581 = scalar_lea.sflag [#allocation4], %s580
        %s582 = sand.u32 %s206, 1
        %s583 = smul.addr %s582, 8
        %s584 = scalar_lea.vmem [#allocation3], %s583
        // Predicated region
        $region53: #{decoder_layer.5} parent=43 // pred_check
          %p585 = pneg %p216
        $region54: #{decoder_layer.5} parent=43 // pred_check_branch
          %587 = sbr.rel (%p585) target = $region56
        $region55: #{decoder_layer.5} parent=43 // pred_region
          %589 = vsyncadd %s581, 0
          %s590 = sadd.s32 %s26, %s25
          %s591 = smul.addr %s590, 8
          %s592 = scalar_lea.hbm %s6, %s591
          %s594 = sshll.u32 %s584, 4
          %s595 = int_to_ptr.vmem [resolvable:$true] %s594
          %s596 = sshll.u32 %s592, 4
          %s597 = int_to_ptr.hbm [resolvable:$true] %s596
          %599 = dma.vmem_to_hbm [thread:$0]  %s595, 128, %s597, %s581
        $region56: #{decoder_layer.5} parent=43 // pred_fallthru
          _
      $region44: #{decoder_layer.5} parent=5 // pred_fallthru
        _
      %p600 = scmp.le.s32.totalorder 2, %s15
      // Predicated region
      $region57: #{decoder_layer.5} parent=5 // pred_check
        %p601 = pneg %p600
      $region58: #{decoder_layer.5} parent=5 // pred_check_branch
        %603 = sbr.rel (%p601) target = $region60
      $region59: #{decoder_layer.5} parent=5 // pred_region
        %s604 = ssub.s32 %s15, 2
        // Predicated region
        $region61: #{decoder_layer.5} parent=59 // pred_check
          %p605 = pneg %p222
        $region62: #{decoder_layer.5} parent=59 // pred_check_branch
          %607 = sbr.rel (%p605) target = $region64
        $region63: #{decoder_layer.5} parent=59 // pred_region
          %s608 = sand.u32 %s207, 1
          %s609 = scalar_lea.sflag [#allocation4], %s608
          %s610 = sand.u32 %s207, 1
          %s611 = smul.addr %s610, 8
          %s612 = scalar_lea.vmem [#allocation3], %s611
          %614 = dma.done %s609, 128
        $region64: #{decoder_layer.5} parent=59 // pred_fallthru
          _
      $region60: #{decoder_layer.5} parent=5 // pred_fallthru
        _
    $region6: #{decoder_layer.5} parent=1 // loop_footer
      %s19 = sadd.s32 1, %s15
    $region7: #{decoder_layer.5} parent=1 // loop_footer_branch
      %14 = sbr.rel target = $region3
    $region8: #{decoder_layer.5} parent=1 // loop_exit
      _
    %615 = vsyncpa [#allocation4], 1
    %s616 = scalar_lea.sflag [#allocation4], 1
    %617 = vsyncpa %s616, 1

// kernel: decoder_layer.4
$region0: #{decoder_layer.4}
  #allocation0 [shape = 'u32[]', space=smem, size = 0x4, offset = 0x4, fixed_abs, tag = 'smem constant byte address 0x4 - core index']
  #allocation1 [shape = 'u32[72,128]{1,0:T(1,128)}', space=vmem, size = 0x9000, scoped, tag = 'internal scratch']
  #allocation2 [shape = 'bf16[32,8]{1,0:T(8,128)(2,1)}', space=vmem, size = 0x2000, scoped, tag = 'scratch operand']
  #allocation3 [shape = 'f32[32,1]{1,0:T(8,128)}', space=vmem, size = 0x4000, scoped, tag = 'scratch operand']
  #allocation4 [shape = 'f32[32,1]{1,0:T(8,128)}', space=vmem, size = 0x4000, scoped, tag = 'scratch operand']
  #allocation5 [shape = 'f32[32,8]{1,0:T(8,128)}', space=vmem, size = 0x4000, scoped, tag = 'scratch operand']
  %s0 = inlined_call_operand.vmem [shape: bf16[2,4,8,8], index: 0, kind: input, shape index: {}]
  %s1 = inlined_call_operand.vmem [shape: f32[2,8,16], index: 1, kind: input, shape index: {}]
  %s2 = inlined_call_operand.vmem [shape: f32[8,8], index: 2, kind: input, shape index: {}]
  %s3 = inlined_call_operand.vmem [shape: f32[8,8], index: 3, kind: input, shape index: {}]
  %s4 = inlined_call_operand.vmem [shape: bf16[2,4,8,8], index: 4, kind: output, shape index: {}]
  %s5 = sld [smem:[#allocation0]]
  $region61: #{decoder_layer.4} parent=0
    _
  %s7 = ssub.s32 1, %s5
  %s8 = scalar_select 0, %s7, %s5
  loop: start=0, step=1, limit=4
  $region2: #{decoder_layer.4} parent=0 // loop_pre_header
    _
  $region3: #{decoder_layer.4} parent=0 // loop_header
    %s10 = sphi 0, %s14
    %p11 = scmp.ge.s32.totalorder %s10, 4
    %s17 = sphi 0, %s43
    %s18 = sphi 0, %s39
    %s19 = sphi 0, %s35
    %s20 = sphi 0, %s31
    %s21 = sphi 0, %s17
    %s22 = sphi 0, %s18
    %s23 = sphi 0, %s19
    %s24 = sphi 0, %s20
    %s25 = sphi 0, %s21
    %s26 = sphi 0, %s22
    %s27 = sphi 0, %s23
    %s28 = sphi 0, %s24
    %s50 = sphi 0, %s52
    %s53 = sphi 0, %s50
    %s54 = sphi 0, %s53
    %s70 = sphi 0, %s54
    %s78 = sphi 0, %s80
    %s81 = sphi 0, %s78
    %s82 = sphi 0, %s81
    %s98 = sphi 0, %s82
    %s104 = sphi 0, %s106
    %s107 = sphi 0, %s104
    %s108 = sphi 0, %s107
    %s124 = sphi 0, %s108
    %s130 = sphi 0, %s132
    %s133 = sphi 0, %s130
    %s134 = sphi 0, %s133
    %s150 = sphi 0, %s134
    %s160 = sphi 0, %s162
    %s163 = sphi 0, %s160
    %s164 = sphi 0, %s163
    %s180 = sphi 0, %s164
  $region4: #{decoder_layer.4} parent=0 // loop_header_branch
    %13 = sbr.rel (%p11) target = $region8
  $region5: #{decoder_layer.4} parent=0 // loop_body
    %s15 = ssub.s32 %s10, 1
    %s16 = ssub.s32 %s10, 2
    %s29 = sadd.s32 1, %s20
    %p30 = scmp.ge.s32.totalorder %s29, 1
    %s31 = scalar_select %p30, 0, %s29
    %s32 = sadd.s32 1, %s19
    %s33 = scalar_select %p30, %s32, %s19
    %p34 = scmp.ge.s32.totalorder %s33, 1
    %s35 = scalar_select %p34, 0, %s33
    %s36 = sadd.s32 1, %s18
    %s37 = scalar_select %p34, %s36, %s18
    %p38 = scmp.ge.s32.totalorder %s37, 1
    %s39 = scalar_select %p38, 0, %s37
    %s40 = sadd.s32 1, %s17
    %s41 = scalar_select %p38, %s40, %s17
    %p42 = scmp.ge.s32.totalorder %s41, 2
    %s43 = scalar_select %p42, 0, %s41
    %s44 = ssub.s32 %s17, %s43
    %s45 = ssub.s32 %s18, %s39
    %s46 = sor.u32 %s44, %s45
    %s47 = ssub.s32 %s19, %s35
    %s48 = sor.u32 %s46, %s47
    %p49 = scmp.eq.s32.totalorder %s48, 0
    %s51 = sadd.s32 %s50, 1
    %s52 = scalar_select %p49, %s50, %s51
    %p55 = pneg %p49
    %p56 = scmp.eq.s32.totalorder %s10, 1
    %p57 = por %p55, %p56
    %p58 = scmp.ne.s32.totalorder %s50, %s53
    %p59 = scmp.eq.s32.totalorder %s10, 0
    %p60 = por %p58, %p59
    %p61 = scmp.ne.s32.totalorder %s50, %s53
    %p62 = scmp.eq.s32.totalorder %s15, 1
    %p63 = por %p61, %p62
    %p64 = scmp.ne.s32.totalorder %s53, %s54
    %p65 = scmp.eq.s32.totalorder %s15, 0
    %p66 = por %p64, %p65
    %p67 = scmp.ne.s32.totalorder %s53, %s54
    %p68 = scmp.eq.s32.totalorder %s16, 1
    %p69 = por %p67, %p68
    %p71 = scmp.ne.s32.totalorder %s54, %s70
    %p72 = scmp.eq.s32.totalorder %s16, 0
    %p73 = por %p71, %p72
    %s74 = ssub.s32 %s17, %s43
    %s75 = ssub.s32 %s20, %s31
    %s76 = sor.u32 %s74, %s75
    %p77 = scmp.eq.s32.totalorder %s76, 0
    %s79 = sadd.s32 %s78, 1
    %s80 = scalar_select %p77, %s78, %s79
    %p83 = pneg %p77
    %p84 = scmp.eq.s32.totalorder %s10, 1
    %p85 = por %p83, %p84
    %p86 = scmp.ne.s32.totalorder %s78, %s81
    %p87 = scmp.eq.s32.totalorder %s10, 0
    %p88 = por %p86, %p87
    %p89 = scmp.ne.s32.totalorder %s78, %s81
    %p90 = scmp.eq.s32.totalorder %s15, 1
    %p91 = por %p89, %p90
    %p92 = scmp.ne.s32.totalorder %s81, %s82
    %p93 = scmp.eq.s32.totalorder %s15, 0
    %p94 = por %p92, %p93
    %p95 = scmp.ne.s32.totalorder %s81, %s82
    %p96 = scmp.eq.s32.totalorder %s16, 1
    %p97 = por %p95, %p96
    %p99 = scmp.ne.s32.totalorder %s82, %s98
    %p100 = scmp.eq.s32.totalorder %s16, 0
    %p101 = por %p99, %p100
    %s102 = ssub.s32 %s19, %s35
    %p103 = scmp.eq.s32.totalorder %s102, 0
    %s105 = sadd.s32 %s104, 1
    %s106 = scalar_select %p103, %s104, %s105
    %p109 = pneg %p103
    %p110 = scmp.eq.s32.totalorder %s10, 1
    %p111 = por %p109, %p110
    %p112 = scmp.ne.s32.totalorder %s104, %s107
    %p113 = scmp.eq.s32.totalorder %s10, 0
    %p114 = por %p112, %p113
    %p115 = scmp.ne.s32.totalorder %s104, %s107
    %p116 = scmp.eq.s32.totalorder %s15, 1
    %p117 = por %p115, %p116
    %p118 = scmp.ne.s32.totalorder %s107, %s108
    %p119 = scmp.eq.s32.totalorder %s15, 0
    %p120 = por %p118, %p119
    %p121 = scmp.ne.s32.totalorder %s107, %s108
    %p122 = scmp.eq.s32.totalorder %s16, 1
    %p123 = por %p121, %p122
    %p125 = scmp.ne.s32.totalorder %s108, %s124
    %p126 = scmp.eq.s32.totalorder %s16, 0
    %p127 = por %p125, %p126
    %s128 = ssub.s32 %s19, %s35
    %p129 = scmp.eq.s32.totalorder %s128, 0
    %s131 = sadd.s32 %s130, 1
    %s132 = scalar_select %p129, %s130, %s131
    %p135 = pneg %p129
    %p136 = scmp.eq.s32.totalorder %s10, 1
    %p137 = por %p135, %p136
    %p138 = scmp.ne.s32.totalorder %s130, %s133
    %p139 = scmp.eq.s32.totalorder %s10, 0
    %p140 = por %p138, %p139
    %p141 = scmp.ne.s32.totalorder %s130, %s133
    %p142 = scmp.eq.s32.totalorder %s15, 1
    %p143 = por %p141, %p142
    %p144 = scmp.ne.s32.totalorder %s133, %s134
    %p145 = scmp.eq.s32.totalorder %s15, 0
    %p146 = por %p144, %p145
    %p147 = scmp.ne.s32.totalorder %s133, %s134
    %p148 = scmp.eq.s32.totalorder %s16, 1
    %p149 = por %p147, %p148
    %p151 = scmp.ne.s32.totalorder %s134, %s150
    %p152 = scmp.eq.s32.totalorder %s16, 0
    %p153 = por %p151, %p152
    %s154 = ssub.s32 %s17, %s43
    %s155 = ssub.s32 %s18, %s39
    %s156 = sor.u32 %s154, %s155
    %s157 = ssub.s32 %s19, %s35
    %s158 = sor.u32 %s156, %s157
    %p159 = scmp.eq.s32.totalorder %s158, 0
    %s161 = sadd.s32 %s160, 1
    %s162 = scalar_select %p159, %s160, %s161
    %p165 = pneg %p159
    %p166 = scmp.eq.s32.totalorder %s10, 1
    %p167 = por %p165, %p166
    %p168 = scmp.ne.s32.totalorder %s160, %s163
    %p169 = scmp.eq.s32.totalorder %s10, 0
    %p170 = por %p168, %p169
    %p171 = scmp.ne.s32.totalorder %s160, %s163
    %p172 = scmp.eq.s32.totalorder %s15, 1
    %p173 = por %p171, %p172
    %p174 = scmp.ne.s32.totalorder %s163, %s164
    %p175 = scmp.eq.s32.totalorder %s15, 0
    %p176 = por %p174, %p175
    %p177 = scmp.ne.s32.totalorder %s163, %s164
    %p178 = scmp.eq.s32.totalorder %s16, 1
    %p179 = por %p177, %p178
    %p181 = scmp.ne.s32.totalorder %s164, %s180
    %p182 = scmp.eq.s32.totalorder %s16, 0
    %p183 = por %p181, %p182
    %p184 = scmp.le.s32.totalorder 1, %s10
    %p185 = scmp.lt.s32.totalorder %s10, 3
    %p186 = pnand %p184, %p185
    %p187 = pneg %p186
    // Predicated region
    $region9: #{decoder_layer.4} parent=5 // pred_check
      _
    $region10: #{decoder_layer.4} parent=5 // pred_check_branch
      %189 = sbr.rel (%p186) target = $region12
    $region11: #{decoder_layer.4} parent=5 // pred_region
      %s190 = ssub.s32 %s10, 1
      // Predicated region
      $region13: #{decoder_layer.4} parent=11 // pred_check
        %p191 = pneg %p120
      $region14: #{decoder_layer.4} parent=11 // pred_check_branch
        %193 = sbr.rel (%p191) target = $region16
      $region15: #{decoder_layer.4} parent=11 // pred_region
        %p194 = scmp.lt.s32.totalorder %s23, 0
        %s195 = scalar_select %p194, %s23, 0
        %s196 = smul.addr %s195, 8
        %s197 = scalar_lea.vmem %s2, %s196
      $region16: #{decoder_layer.4} parent=11 // pred_fallthru
        _
      // Predicated region
      $region17: #{decoder_layer.4} parent=11 // pred_check
        %p198 = pneg %p146
      $region18: #{decoder_layer.4} parent=11 // pred_check_branch
        %200 = sbr.rel (%p198) target = $region20
      $region19: #{decoder_layer.4} parent=11 // pred_region
        %p201 = scmp.lt.s32.totalorder %s23, 0
        %s202 = scalar_select %p201, %s23, 0
        %s203 = smul.addr %s202, 8
        %s204 = scalar_lea.vmem %s3, %s203
      $region20: #{decoder_layer.4} parent=11 // pred_fallthru
        _
    $region12: #{decoder_layer.4} parent=5 // pred_fallthru
      _
    %p205 = scmp.lt.s32.totalorder %s10, 2
    // Predicated region
    $region21: #{decoder_layer.4} parent=5 // pred_check
      %p206 = pneg %p205
    $region22: #{decoder_layer.4} parent=5 // pred_check_branch
      %208 = sbr.rel (%p206) target = $region24
    $region23: #{decoder_layer.4} parent=5 // pred_region
      // Predicated region
      $region25: #{decoder_layer.4} parent=23 // pred_check
        %p209 = pneg %p60
      $region26: #{decoder_layer.4} parent=23 // pred_check_branch
        %211 = sbr.rel (%p209) target = $region28
      $region27: #{decoder_layer.4} parent=23 // pred_region
        %s212 = smul.u32 4, %s18
        %p213 = scmp.lt.s32.totalorder %s17, 1
        %s214 = scalar_select %p213, %s17, 1
        %p215 = scmp.lt.s32.totalorder %s212, 3
        %s216 = scalar_select %p215, %s212, 3
        %p217 = scmp.lt.s32.totalorder %s19, 0
        %s218 = scalar_select %p217, %s19, 0
        %s219 = sadd.s32 %s218, %s216
        %s220 = smul.addr %s214, 4
        %s221 = sadd.s32 %s219, %s220
        %s222 = smul.addr %s221, 4
        %s223 = scalar_lea.vmem %s0, %s222
        %s224 = smul.u32 4, %s18
      $region28: #{decoder_layer.4} parent=23 // pred_fallthru
        _
      // Predicated region
      $region29: #{decoder_layer.4} parent=23 // pred_check
        %p225 = pneg %p88
      $region30: #{decoder_layer.4} parent=23 // pred_check_branch
        %227 = sbr.rel (%p225) target = $region32
      $region31: #{decoder_layer.4} parent=23 // pred_region
        %p228 = scmp.lt.s32.totalorder %s17, 1
        %s229 = scalar_select %p228, %s17, 1
        %p230 = scmp.lt.s32.totalorder %s20, 0
        %s231 = scalar_select %p230, %s20, 0
        %s232 = sadd.s32 %s231, %s229
        %s233 = smul.addr %s232, 8
        %s234 = scalar_lea.vmem %s1, %s233
      $region32: #{decoder_layer.4} parent=23 // pred_fallthru
        _
    $region24: #{decoder_layer.4} parent=5 // pred_fallthru
      _
    %p235 = scmp.le.s32.totalorder 1, %s10
    %p236 = scmp.lt.s32.totalorder %s10, 3
    %p237 = pnand %p235, %p236
    %p238 = pneg %p237
    // Predicated region
    $region33: #{decoder_layer.4} parent=5 // pred_check
      _
    $region34: #{decoder_layer.4} parent=5 // pred_check_branch
      %240 = sbr.rel (%p237) target = $region36
    $region35: #{decoder_layer.4} parent=5 // pred_region
      %s241 = ssub.s32 %s10, 1
      %s242 = smul.u32 4, %s22
      %p243 = scmp.lt.s32.totalorder %s21, 1
      %s244 = scalar_select %p243, %s21, 1
      %p245 = scmp.lt.s32.totalorder %s242, 3
      %s246 = scalar_select %p245, %s242, 3
      %p247 = scmp.lt.s32.totalorder %s23, 0
      %s248 = scalar_select %p247, %s23, 0
      %s249 = sadd.s32 %s248, %s246
      %s250 = smul.addr %s244, 4
      %s251 = sadd.s32 %s249, %s250
      %s252 = smul.addr %s251, 4
      %s253 = scalar_lea.vmem %s0, %s252
      %p254 = pneg %p66
      %p255 = pneg %p63
      %p256 = scmp.lt.s32.totalorder %s21, 1
      %s257 = scalar_select %p256, %s21, 1
      %p258 = scmp.lt.s32.totalorder %s24, 0
      %s259 = scalar_select %p258, %s24, 0
      %s260 = sadd.s32 %s259, %s257
      %s261 = smul.addr %s260, 8
      %s262 = scalar_lea.vmem %s1, %s261
      %p263 = pneg %p94
      %p264 = pneg %p91
      %p265 = scmp.lt.s32.totalorder %s23, 0
      %s266 = scalar_select %p265, %s23, 0
      %s267 = smul.addr %s266, 8
      %s268 = scalar_lea.vmem %s2, %s267
      %p269 = pneg %p120
      %p270 = pneg %p117
      %p271 = scmp.lt.s32.totalorder %s23, 0
      %s272 = scalar_select %p271, %s23, 0
      %s273 = smul.addr %s272, 8
      %s274 = scalar_lea.vmem %s3, %s273
      %p275 = pneg %p146
      %p276 = pneg %p143
      %p277 = pneg %p176
      %p278 = pneg %p173
      %s279 = smul.u32 4, %s22
      %p280 = scmp.lt.s32.totalorder %s21, 1
      %s281 = scalar_select %p280, %s21, 1
      %p282 = scmp.lt.s32.totalorder %s279, 3
      %s283 = scalar_select %p282, %s279, 3
      %p284 = scmp.lt.s32.totalorder %s23, 0
      %s285 = scalar_select %p284, %s23, 0
      %s286 = sadd.s32 %s285, %s283
      %s287 = smul.addr %s281, 4
      %s288 = sadd.s32 %s286, %s287
      %s289 = smul.addr %s288, 4
      %s290 = scalar_lea.vmem %s4, %s289
      %s291 = smul.u32 4, %s22
      %p292 = scmp.lt.s32.totalorder %s21, 1
      %s293 = scalar_select %p292, %s21, 1
      %p294 = scmp.lt.s32.totalorder %s291, 3
      %s295 = scalar_select %p294, %s291, 3
      %p296 = scmp.lt.s32.totalorder %s23, 0
      %s297 = scalar_select %p296, %s23, 0
      %s298 = sadd.s32 %s297, %s295
      %s299 = smul.addr %s293, 4
      %s300 = sadd.s32 %s298, %s299
      %s301 = smul.addr %s300, 4
      %s302 = scalar_lea.vmem %s0, %s301
      %s303 = smul.u32 4, %s22
      %p304 = scmp.lt.s32.totalorder %s21, 1
      %s305 = scalar_select %p304, %s21, 1
      %p306 = scmp.lt.s32.totalorder %s24, 0
      %s307 = scalar_select %p306, %s24, 0
      %s308 = sadd.s32 %s307, %s305
      %s309 = smul.addr %s308, 8
      %s310 = scalar_lea.vmem %s1, %s309
      %p311 = scmp.lt.s32.totalorder %s23, 0
      %s312 = scalar_select %p311, %s23, 0
      %s313 = smul.addr %s312, 8
      %s314 = scalar_lea.vmem %s2, %s313
      %p315 = scmp.lt.s32.totalorder %s23, 0
      %s316 = scalar_select %p315, %s23, 0
      %s317 = smul.addr %s316, 8
      %s318 = scalar_lea.vmem %s3, %s317
      %s319 = smul.u32 4, %s22
      %p320 = scmp.lt.s32.totalorder %s21, 1
      %s321 = scalar_select %p320, %s21, 1
      %p322 = scmp.lt.s32.totalorder %s319, 3
      %s323 = scalar_select %p322, %s319, 3
      %p324 = scmp.lt.s32.totalorder %s23, 0
      %s325 = scalar_select %p324, %s23, 0
      %s326 = sadd.s32 %s325, %s323
      %s327 = smul.addr %s321, 4
      %s328 = sadd.s32 %s326, %s327
      %s329 = smul.addr %s328, 4
      %s330 = scalar_lea.vmem %s4, %s329
      %s331 = smul.u32 4, %s22
      %p333 = scmp.eq.s32.totalorder %s24, 0
      // Predicated region
      $region37: #{decoder_layer.4} parent=35 // pred_check
        %p334 = pneg %p333
      $region38: #{decoder_layer.4} parent=35 // pred_check_branch
        %336 = sbr.rel (%p334) target = $region40
      $region39: #{decoder_layer.4} parent=35 // pred_region
        %v337 = vld [vmem:[%s302] sm:$0xf]
        %v338 = vld [vmem:[%s302 + $0x4] sm:$0xf]
        %v339 = vld [vmem:[%s302 + $0x8] sm:$0xf]
        %v340 = vld [vmem:[%s302 + $0xc] sm:$0xf]
        %v341 = vunpack.c.l.bf16 %v337
        %v342 = vunpack.c.l.bf16 %v338
        %v343 = vunpack.c.l.bf16 %v339
        %v344 = vunpack.c.l.bf16 %v340
        %v345 = vld [vmem:[%s314] sm:$0xff]
        %v346 = vld [vmem:[%s318] sm:$0xff]
        %v347 = vmul.f32 %v341, %v345
        %v348 = vmul.f32 %v342, %v345
        %v349 = vmul.f32 %v343, %v345
        %v350 = vmul.f32 %v344, %v345
        %v351 = vsub.f32 0.0, %v341
        %v352 = vsub.f32 0.0, %v342
        %v353 = vsub.f32 0.0, %v343
        %v354 = vsub.f32 0.0, %v344
        %359 = vrot.lane.b32.xlu0 %v351, 124
        %v360 = vpop.permute.xlu0 %359
        %361 = vrot.lane.b32.xlu0 %v352, 124
        %v362 = vpop.permute.xlu0 %361
        %363 = vrot.lane.b32.xlu0 %v353, 124
        %v364 = vpop.permute.xlu0 %363
        %365 = vrot.lane.b32.xlu0 %v354, 124
        %v366 = vpop.permute.xlu0 %365
        %375 = vrot.lane.b32.xlu0 %v341, 4
        %v376 = vpop.permute.xlu0 %375
        %377 = vrot.lane.b32.xlu0 %v342, 4
        %v378 = vpop.permute.xlu0 %377
        %379 = vrot.lane.b32.xlu0 %v343, 4
        %v380 = vpop.permute.xlu0 %379
        %381 = vrot.lane.b32.xlu0 %v344, 4
        %v382 = vpop.permute.xlu0 %381
        %vm387 = vcmask 31744
        %v388 = vsel %vm387, %v360, %v376
        %v389 = vsel %vm387, %v362, %v378
        %v390 = vsel %vm387, %v364, %v380
        %v391 = vsel %vm387, %v366, %v382
        %v392 = vmul.f32 %v388, %v346
        %v393 = vmul.f32 %v389, %v346
        %v394 = vmul.f32 %v390, %v346
        %v395 = vmul.f32 %v391, %v346
        %v396 = vadd.f32 %v347, %v392
        %v397 = vadd.f32 %v348, %v393
        %v398 = vadd.f32 %v349, %v394
        %v399 = vadd.f32 %v350, %v395
        %v400 = vmul.f32 %v396, 0.35355338
        %v401 = vmul.f32 %v397, 0.35355338
        %v402 = vmul.f32 %v398, 0.35355338
        %v403 = vmul.f32 %v399, 0.35355338
        %v404 = vpack.c.bf16 %v400, %v400
        %v405 = vpack.c.bf16 %v401, %v401
        %v406 = vpack.c.bf16 %v402, %v402
        %v407 = vpack.c.bf16 %v403, %v403
        %vm408 = vcmask 60416
        %409 = vst.msk [vmem:[#allocation2] sm:$0xf] %vm408, %v404
        %410 = vst.msk [vmem:[#allocation2 + $0x4] sm:$0xf] %vm408, %v405
        %411 = vst.msk [vmem:[#allocation2 + $0x8] sm:$0xf] %vm408, %v406
        %412 = vst.msk [vmem:[#allocation2 + $0xc] sm:$0xf] %vm408, %v407
        %vm413 = vcmask 7168
        %414 = vst.msk [vmem:[#allocation3] sm:$0xff] %vm413, -1e+30
        %415 = vst.msk [vmem:[#allocation3 + $0x8] sm:$0xff] %vm413, -1e+30
        %416 = vst.msk [vmem:[#allocation3 + $0x10] sm:$0xff] %vm413, -1e+30
        %417 = vst.msk [vmem:[#allocation3 + $0x18] sm:$0xff] %vm413, -1e+30
        %418 = vst.msk [vmem:[#allocation4] sm:$0xff] %vm413, 0.0
        %419 = vst.msk [vmem:[#allocation4 + $0x8] sm:$0xff] %vm413, 0.0
        %420 = vst.msk [vmem:[#allocation4 + $0x10] sm:$0xff] %vm413, 0.0
        %421 = vst.msk [vmem:[#allocation4 + $0x18] sm:$0xff] %vm413, 0.0
        %vm422 = vcmask 64512
        %423 = vst.msk [vmem:[#allocation5] sm:$0xff] %vm422, 0.0
        %424 = vst.msk [vmem:[#allocation5 + $0x8] sm:$0xff] %vm422, 0.0
        %425 = vst.msk [vmem:[#allocation5 + $0x10] sm:$0xff] %vm422, 0.0
        %426 = vst.msk [vmem:[#allocation5 + $0x18] sm:$0xff] %vm422, 0.0
      $region40: #{decoder_layer.4} parent=35 // pred_fallthru
        _
      %s427 = smul.u32 %s24, 8
      %s428 = smul.u32 %s23, 8
      %s429 = sadd.s32 %s428, 7
      %p430 = scmp.le.s32.totalorder %s427, %s429
      // Predicated region
      $region41: #{decoder_layer.4} parent=35 // pred_check
        %p431 = pneg %p430
      $region42: #{decoder_layer.4} parent=35 // pred_check_branch
        %433 = sbr.rel (%p431) target = $region44
      $region43: #{decoder_layer.4} parent=35 // pred_region
        %v434 = vld [vmem:[%s310] sm:$0xff]
        %v435 = vpack.c.bf16 %v434, %v434
        %v436 = vld [vmem:[#allocation2] sm:$0xf]
        %v437 = vld [vmem:[#allocation2 + $0x4] sm:$0xf]
        %v438 = vld [vmem:[#allocation2 + $0x8] sm:$0xf]
        %v439 = vld [vmem:[#allocation2 + $0xc] sm:$0xf]
        %v444 = vunpack.c.l.b16 %v436
        %v445 = vunpack.c.l.b16 %v437
        %v446 = vunpack.c.l.b16 %v438
        %v447 = vunpack.c.l.b16 %v439
        %v448 = vpack.c.b16 %v445, %v444
        %v449 = vpack.c.b16 %v447, %v446
        %vm450 = vcmask 64512
        %v452 = vsel %vm450, %v448, 0
        %v455 = vsel %vm450, %v449, 0
        %v458 = vsel %vm450, %v435, 0
        %460 = vmatpush.bf16.xpose.msra.mxu0 0
        %461 = vmatpush.bf16.xpose.msra.mxu0 0
        %462 = vmatpush.bf16.xpose.msra.mxu0 0
        %463 = vmatpush.bf16.xpose.msra.mxu0 0
        %464 = vmatpush.bf16.xpose.msra.mxu0 0
        %465 = vmatpush.bf16.xpose.msra.mxu0 0
        %466 = vmatpush.bf16.xpose.msra.mxu0 0
        %467 = vmatpush.bf16.xpose.msra.mxu0 %v458
        %468 = vmatmul.bf16.gmra.mxu0 %v452
        %v469 = vpop.f32.mrf.mxu0
        %v470 = vadd.f32 0.0, %v469
        %v471 = vpop.f32.mrf.mxu0
        %v472 = vadd.f32 0.0, %v471
        %473 = vmatmul.bf16.gmra.mxu0 %v455
        %v474 = vpop.f32.mrf.mxu0
        %v475 = vadd.f32 0.0, %v474
        %v476 = vpop.f32.mrf.mxu0
        %v477 = vadd.f32 0.0, %v476
        %478 = vdwg.mxu0
        %v479 = vlaneseq
        %v480 = vshrl.u32 %v479, 7
        %v481 = vadd.s32 %v480, 8
        %v482 = vadd.s32 %v480, 16
        %v483 = vadd.s32 %v480, 24
        %vm484 = vcmp.lt.s32.totalorder %v480, 0
        %v485 = vsub.s32 0, %v480
        %v486 = vsel %vm484, %v485, %v480
        %v487 = vshrl.u32 %v486, 3
        %v488 = vand.u32 %v486, 7
        %v489 = vsub.s32 0, %v488
        %v490 = vsel %vm484, %v489, %v488
        %vm491 = vcmp.lt.s32.totalorder %v481, 0
        %v492 = vsub.s32 0, %v481
        %v493 = vsel %vm491, %v492, %v481
        %v494 = vshrl.u32 %v493, 3
        %v495 = vand.u32 %v493, 7
        %v496 = vsub.s32 0, %v495
        %v497 = vsel %vm491, %v496, %v495
        %vm498 = vcmp.lt.s32.totalorder %v482, 0
        %v499 = vsub.s32 0, %v482
        %v500 = vsel %vm498, %v499, %v482
        %v501 = vshrl.u32 %v500, 3
        %v502 = vand.u32 %v500, 7
        %v503 = vsub.s32 0, %v502
        %v504 = vsel %vm498, %v503, %v502
        %vm505 = vcmp.lt.s32.totalorder %v483, 0
        %v506 = vsub.s32 0, %v483
        %v507 = vsel %vm505, %v506, %v483
        %v508 = vshrl.u32 %v507, 3
        %v509 = vand.u32 %v507, 7
        %v510 = vsub.s32 0, %v509
        %v511 = vsel %vm505, %v510, %v509
        %vm512 = vcmp.ne.s32.totalorder %v490, 0
        %vm513 = vcmp.ne.s32.totalorder %v497, 0
        %vm514 = vcmp.ne.s32.totalorder %v504, 0
        %vm515 = vcmp.ne.s32.totalorder %v511, 0
        %vm516 = vcmp.lt.s32.totalorder %v490, 0
        %vm517 = vcmp.lt.s32.totalorder %v497, 0
        %vm518 = vcmp.lt.s32.totalorder %v504, 0
        %vm519 = vcmp.lt.s32.totalorder %v511, 0
        %vm520 = vmand %vm516, %vm512
        %vm521 = vmand %vm517, %vm513
        %vm522 = vmand %vm518, %vm514
        %vm523 = vmand %vm519, %vm515
        %v524 = vadd.s32 %v490, 8
        %v525 = vadd.s32 %v497, 8
        %v526 = vadd.s32 %v504, 8
        %v527 = vadd.s32 %v511, 8
        %v528 = vsel %vm520, %v524, %v490
        %v529 = vsel %vm521, %v525, %v497
        %v530 = vsel %vm522, %v526, %v504
        %v531 = vsel %vm523, %v527, %v511
        %v532 = vstv %s428
        %v533 = vadd.s32 %v532, %v528
        %v534 = vadd.s32 %v532, %v529
        %v535 = vadd.s32 %v532, %v530
        %v536 = vadd.s32 %v532, %v531
        %v537 = vlaneseq
        %v538 = vand.u32 %v537, 127
        %v539 = vstv %s427
        %v540 = vadd.s32 %v539, %v538
        %vm541 = vcmp.le.s32.totalorder %v540, %v533
        %vm542 = vcmp.le.s32.totalorder %v540, %v534
        %vm543 = vcmp.le.s32.totalorder %v540, %v535
        %vm544 = vcmp.le.s32.totalorder %v540, %v536
        %v545 = vsel %vm541, %v470, -1e+30
        %v546 = vsel %vm542, %v472, -1e+30
        %v547 = vsel %vm543, %v475, -1e+30
        %v548 = vsel %vm544, %v477, -1e+30
        %v549 = vld [vmem:[#allocation3] sm:$0xff]
        %v550 = vld [vmem:[#allocation3 + $0x8] sm:$0xff]
        %v551 = vld [vmem:[#allocation3 + $0x10] sm:$0xff]
        %v552 = vld [vmem:[#allocation3 + $0x18] sm:$0xff]
        %v553 = vsel %vm450, %v545, -inf
        %554 = vmax.xlane.f32.xlu0 %v553
        %v555 = vpop.xlane.xlu0 %554
        %v556 = vsel %vm450, %v546, -inf
        %557 = vmax.xlane.f32.xlu0 %v556
        %v558 = vpop.xlane.xlu0 %557
        %v559 = vsel %vm450, %v547, -inf
        %560 = vmax.xlane.f32.xlu0 %v559
        %v561 = vpop.xlane.xlu0 %560
        %v562 = vsel %vm450, %v548, -inf
        %563 = vmax.xlane.f32.xlu0 %v562
        %v564 = vpop.xlane.xlu0 %563
        %v565 = vmax.f32 %v549, %v555
        %v566 = vmax.f32 %v550, %v558
        %v567 = vmax.f32 %v551, %v561
        %v568 = vmax.f32 %v552, %v564
        %v569 = vsub.f32 %v549, %v565
        %v570 = vsub.f32 %v550, %v566
        %v571 = vsub.f32 %v551, %v567
        %v572 = vsub.f32 %v552, %v568
        %v573 = vmul.f32 %v569, 1.442695
        %v574 = vpow.pop %v573
        %v575 = vmul.f32 %v570, 1.442695
        %v576 = vpow.pop %v575
        %v577 = vmul.f32 %v571, 1.442695
        %v578 = vpow.pop %v577
        %v579 = vmul.f32 %v572, 1.442695
        %v580 = vpow.pop %v579
        %582 = vset.pattern.permute.xlu0 0
        %583 = vperm.xlu0 %582, %v565
        %v584 = vpop.permute.xlu0 %583
        %587 = vset.pattern.permute.xlu0 0
        %588 = vperm.xlu0 %587, %v566
        %v589 = vpop.permute.xlu0 %588
        %592 = vset.pattern.permute.xlu0 0
        %593 = vperm.xlu0 %592, %v567
        %v594 = vpop.permute.xlu0 %593
        %597 = vset.pattern.permute.xlu0 0
        %598 = vperm.xlu0 %597, %v568
        %v599 = vpop.permute.xlu0 %598
        %v601 = vsub.f32 %v545, %v584
        %v602 = vsub.f32 %v546, %v589
        %v603 = vsub.f32 %v547, %v594
        %v604 = vsub.f32 %v548, %v599
        %v605 = vmul.f32 %v601, 1.442695
        %v606 = vpow.pop %v605
        %v607 = vmul.f32 %v602, 1.442695
        %v608 = vpow.pop %v607
        %v609 = vmul.f32 %v603, 1.442695
        %v610 = vpow.pop %v609
        %v611 = vmul.f32 %v604, 1.442695
        %v612 = vpow.pop %v611
        %v613 = vld [vmem:[#allocation4] sm:$0xff]
        %v614 = vld [vmem:[#allocation4 + $0x8] sm:$0xff]
        %v615 = vld [vmem:[#allocation4 + $0x10] sm:$0xff]
        %v616 = vld [vmem:[#allocation4 + $0x18] sm:$0xff]
        %v617 = vmul.f32 %v574, %v613
        %v618 = vmul.f32 %v576, %v614
        %v619 = vmul.f32 %v578, %v615
        %v620 = vmul.f32 %v580, %v616
        %v621 = vsel %vm450, %v606, 0.0
        %622 = vadd.xlane.f32.xlu0 %v621
        %v623 = vpop.xlane.xlu0 %622
        %v624 = vsel %vm450, %v608, 0.0
        %625 = vadd.xlane.f32.xlu0 %v624
        %v626 = vpop.xlane.xlu0 %625
        %v627 = vsel %vm450, %v610, 0.0
        %628 = vadd.xlane.f32.xlu0 %v627
        %v629 = vpop.xlane.xlu0 %628
        %v630 = vsel %vm450, %v612, 0.0
        %631 = vadd.xlane.f32.xlu0 %v630
        %v632 = vpop.xlane.xlu0 %631
        %v633 = vadd.f32 %v617, %v623
        %v634 = vadd.f32 %v618, %v626
        %v635 = vadd.f32 %v619, %v629
        %v636 = vadd.f32 %v620, %v632
        %vm637 = vcmask 7168
        %638 = vst.msk [vmem:[#allocation4] sm:$0xff] %vm637, %v633
        %639 = vst.msk [vmem:[#allocation4 + $0x8] sm:$0xff] %vm637, %v634
        %640 = vst.msk [vmem:[#allocation4 + $0x10] sm:$0xff] %vm637, %v635
        %641 = vst.msk [vmem:[#allocation4 + $0x18] sm:$0xff] %vm637, %v636
        %v642 = vld [vmem:[#allocation5] sm:$0xff]
        %v643 = vld [vmem:[#allocation5 + $0x8] sm:$0xff]
        %v644 = vld [vmem:[#allocation5 + $0x10] sm:$0xff]
        %v645 = vld [vmem:[#allocation5 + $0x18] sm:$0xff]
        %647 = vset.pattern.permute.xlu0 0
        %648 = vperm.xlu0 %647, %v574
        %v649 = vpop.permute.xlu0 %648
        %652 = vset.pattern.permute.xlu0 0
        %653 = vperm.xlu0 %652, %v576
        %v654 = vpop.permute.xlu0 %653
        %657 = vset.pattern.permute.xlu0 0
        %658 = vperm.xlu0 %657, %v578
        %v659 = vpop.permute.xlu0 %658
        %662 = vset.pattern.permute.xlu0 0
        %663 = vperm.xlu0 %662, %v580
        %v664 = vpop.permute.xlu0 %663
        %v666 = vmul.f32 %v649, %v642
        %v667 = vmul.f32 %v654, %v643
        %v668 = vmul.f32 %v659, %v644
        %v669 = vmul.f32 %v664, %v645
        %v670 = vpack.c.bf16 %v608, %v606
        %v671 = vpack.c.bf16 %v612, %v610
        %673 = vrot.lane.b32.xlu0 %v435, 120
        %v674 = vpop.permute.xlu0 %673
        %v676 = vsel %vm450, %v670, 0
        %v679 = vsel %vm450, %v671, 0
        %vm681 = vcmask 1043456
        %v683 = vsel %vm681, %v674, 0
        %685 = vmatpush.bf16.msra.mxu0 0
        %686 = vmatpush.bf16.msra.mxu0 0
        %687 = vmatpush.bf16.msra.mxu0 0
        %688 = vmatpush.bf16.msra.mxu0 0
        %689 = vmatpush.bf16.msra.mxu0 0
        %690 = vmatpush.bf16.msra.mxu0 0
        %691 = vmatpush.bf16.msra.mxu0 0
        %692 = vmatpush.bf16.msra.mxu0 %v683
        %693 = vmatmul.bf16.gmra.mxu0 %v676
        %v694 = vpop.f32.mrf.mxu0
        %v695 = vadd.f32 0.0, %v694
        %v696 = vpop.f32.mrf.mxu0
        %v697 = vadd.f32 0.0, %v696
        %698 = vmatmul.bf16.gmra.mxu0 %v679
        %v699 = vpop.f32.mrf.mxu0
        %v700 = vadd.f32 0.0, %v699
        %v701 = vpop.f32.mrf.mxu0
        %v702 = vadd.f32 0.0, %v701
        %703 = vdwg.mxu0
        %v704 = vadd.f32 %v666, %v695
        %v705 = vadd.f32 %v667, %v697
        %v706 = vadd.f32 %v668, %v700
        %v707 = vadd.f32 %v669, %v702
        %708 = vst.msk [vmem:[#allocation5] sm:$0xff] %vm450, %v704
        %709 = vst.msk [vmem:[#allocation5 + $0x8] sm:$0xff] %vm450, %v705
        %710 = vst.msk [vmem:[#allocation5 + $0x10] sm:$0xff] %vm450, %v706
        %711 = vst.msk [vmem:[#allocation5 + $0x18] sm:$0xff] %vm450, %v707
        %712 = vst.msk [vmem:[#allocation3] sm:$0xff] %vm637, %v565
        %713 = vst.msk [vmem:[#allocation3 + $0x8] sm:$0xff] %vm637, %v566
        %714 = vst.msk [vmem:[#allocation3 + $0x10] sm:$0xff] %vm637, %v567
        %715 = vst.msk [vmem:[#allocation3 + $0x18] sm:$0xff] %vm637, %v568
      $region44: #{decoder_layer.4} parent=35 // pred_fallthru
        _
      // Predicated region
      $region45: #{decoder_layer.4} parent=35 // pred_check
        %p716 = pneg %p333
      $region46: #{decoder_layer.4} parent=35 // pred_check_branch
        %718 = sbr.rel (%p716) target = $region48
      $region47: #{decoder_layer.4} parent=35 // pred_region
        %v719 = vld [vmem:[#allocation5] sm:$0xff]
        %v720 = vld [vmem:[#allocation5 + $0x8] sm:$0xff]
        %v721 = vld [vmem:[#allocation5 + $0x10] sm:$0xff]
        %v722 = vld [vmem:[#allocation5 + $0x18] sm:$0xff]
        %v723 = vld [vmem:[#allocation4] sm:$0xff]
        %v724 = vld [vmem:[#allocation4 + $0x8] sm:$0xff]
        %v725 = vld [vmem:[#allocation4 + $0x10] sm:$0xff]
        %v726 = vld [vmem:[#allocation4 + $0x18] sm:$0xff]
        %v727 = vrcp.pop %v723
        %v728 = vrcp.pop %v724
        %v729 = vrcp.pop %v725
        %v730 = vrcp.pop %v726
        %732 = vset.pattern.permute.xlu0 0
        %733 = vperm.xlu0 %732, %v727
        %v734 = vpop.permute.xlu0 %733
        %737 = vset.pattern.permute.xlu0 0
        %738 = vperm.xlu0 %737, %v728
        %v739 = vpop.permute.xlu0 %738
        %742 = vset.pattern.permute.xlu0 0
        %743 = vperm.xlu0 %742, %v729
        %v744 = vpop.permute.xlu0 %743
        %747 = vset.pattern.permute.xlu0 0
        %748 = vperm.xlu0 %747, %v730
        %v749 = vpop.permute.xlu0 %748
        %v751 = vmul.f32 %v719, %v734
        %v752 = vmul.f32 %v720, %v739
        %v753 = vmul.f32 %v721, %v744
        %v754 = vmul.f32 %v722, %v749
        %v755 = vpack.c.bf16 %v751, %v751
        %v756 = vpack.c.bf16 %v752, %v752
        %v757 = vpack.c.bf16 %v753, %v753
        %v758 = vpack.c.bf16 %v754, %v754
        %vm759 = vcmask 60416
        %760 = vst.msk [vmem:[%s330] sm:$0xf] %vm759, %v755
        %761 = vst.msk [vmem:[%s330 + $0x4] sm:$0xf] %vm759, %v756
        %762 = vst.msk [vmem:[%s330 + $0x8] sm:$0xf] %vm759, %v757
        %763 = vst.msk [vmem:[%s330 + $0xc] sm:$0xf] %vm759, %v758
      $region48: #{decoder_layer.4} parent=35 // pred_fallthru
        _
      %s764 = smul.u32 4, %s22
      %p765 = scmp.lt.s32.totalorder %s21, 1
      %s766 = scalar_select %p765, %s21, 1
      %p767 = scmp.lt.s32.totalorder %s764, 3
      %s768 = scalar_select %p767, %s764, 3
      %p769 = scmp.lt.s32.totalorder %s23, 0
      %s770 = scalar_select %p769, %s23, 0
      %s771 = sadd.s32 %s770, %s768
      %s772 = smul.addr %s766, 4
      %s773 = sadd.s32 %s771, %s772
      %s774 = smul.addr %s773, 4
      %s775 = scalar_lea.vmem %s4, %s774
      // Predicated region
      $region49: #{decoder_layer.4} parent=35 // pred_check
        %p776 = pneg %p173
      $region50: #{decoder_layer.4} parent=35 // pred_check_branch
        %778 = sbr.rel (%p776) target = $region52
      $region51: #{decoder_layer.4} parent=35 // pred_region
        %s779 = smul.u32 4, %s22
      $region52: #{decoder_layer.4} parent=35 // pred_fallthru
        _
    $region36: #{decoder_layer.4} parent=5 // pred_fallthru
      _
    %p780 = scmp.le.s32.totalorder 2, %s10
    // Predicated region
    $region53: #{decoder_layer.4} parent=5 // pred_check
      %p781 = pneg %p780
    $region54: #{decoder_layer.4} parent=5 // pred_check_branch
      %783 = sbr.rel (%p781) target = $region56
    $region55: #{decoder_layer.4} parent=5 // pred_region
      %s784 = ssub.s32 %s10, 2
      // Predicated region
      $region57: #{decoder_layer.4} parent=55 // pred_check
        %p785 = pneg %p179
      $region58: #{decoder_layer.4} parent=55 // pred_check_branch
        %787 = sbr.rel (%p785) target = $region60
      $region59: #{decoder_layer.4} parent=55 // pred_region
        %s788 = smul.u32 4, %s26
        %p789 = scmp.lt.s32.totalorder %s25, 1
        %s790 = scalar_select %p789, %s25, 1
        %p791 = scmp.lt.s32.totalorder %s788, 3
        %s792 = scalar_select %p791, %s788, 3
        %p793 = scmp.lt.s32.totalorder %s27, 0
        %s794 = scalar_select %p793, %s27, 0
        %s795 = sadd.s32 %s794, %s792
        %s796 = smul.addr %s790, 4
        %s797 = sadd.s32 %s795, %s796
        %s798 = smul.addr %s797, 4
        %s799 = scalar_lea.vmem %s4, %s798
      $region60: #{decoder_layer.4} parent=55 // pred_fallthru
        _
    $region56: #{decoder_layer.4} parent=5 // pred_fallthru
      _
  $region6: #{decoder_layer.4} parent=0 // loop_footer
    %s14 = sadd.s32 1, %s10
  $region7: #{decoder_layer.4} parent=0 // loop_footer_branch
    %9 = sbr.rel target = $region3
  $region8: #{decoder_layer.4} parent=0 // loop_exit
    _

</llo_original>
